<compile_context>
chip_gen: v7x
topology: tpu7x:2x2x1
jax: 0.10.0
libtpu: 0.0.40
codegen_flags: <defaults>
</compile_context>

<pallas_src>
import functools
import math

import jax
import jax.numpy as jnp
from jax.experimental import pallas as pl
from jax.experimental.pallas import tpu as pltpu


def _bilstm2_kernel(
    x_ref,        # (T*BP, Din)   layer-0 input, time-major row blocks (t*BP + b)
    wih0_ref,     # (Din, 8H)     layer-0 input proj, per-gate interleaved [*_f | *_b]
    whh0_ref,     # (2H, 8H)      layer-0 recurrent proj, block-diagonal over directions
    b0_ref,       # (1, 8H)       layer-0 fused bias (b_ih + b_hh), same column layout
    wih1_ref,     # (2H, 8H)      layer-1 input proj
    whh1_ref,     # (2H, 8H)
    b1_ref,       # (1, 8H)
    out_ref,      # (T*BP, 2H)    final output: [:, :H]=fwd, [:, H:]=bwd
    gates_scr,    # (T*BP, 8H)    VMEM scratch: precomputed x-projection gates
    *, seq_len, batch_p, hidden,
):
    T, B, H = seq_len, batch_p, hidden
    H2, H4, H6, H8 = 2 * H, 4 * H, 6 * H, 8 * H

    # Lane mask selecting the forward-direction half of every 2H gate strip.
    # Built once (hoisted) and reused for both layers / all steps.
    lane = jax.lax.broadcasted_iota(jnp.int32, (B, H8), 1)
    fwd_mask = (lane % H2) < H

    def run_layer(x2d, wih_ref, whh_ref, b_ref):
        # Input projection for BOTH directions and all time steps in one MXU
        # matmul (off the serial recurrence path), bias fused.  DEFAULT precision
        # => single bf16 MXU pass.
        gates_scr[...] = (
            jnp.dot(x2d, wih_ref[...], preferred_element_type=jnp.float32)
            + b_ref[...]
        )

        whh = whh_ref[...]                        # hoisted out of the time loop
        h = jnp.zeros((B, H2), jnp.float32)       # [h_fwd | h_bwd]
        c = jnp.zeros((B, H2), jnp.float32)
        h_steps = []

        # Static, fully unrolled time loop.  At step s: fwd direction consumes
        # time s, bwd direction consumes time T-1-s.
        for s in range(T):
            sr = T - 1 - s
            # Aligned full-sublane loads (B = padded to 8, offsets multiples of 8).
            g_t = gates_scr[pl.ds(s * B, B), :]    # row block for time s
            g_r = gates_scr[pl.ds(sr * B, B), :]   # row block for time T-1-s
            # Step-aligned gate input: fwd strips from time s, bwd strips from
            # time T-1-s.  One vselect, independent of h (overlaps with the
            # previous step's serial chain).
            gx = jnp.where(fwd_mask, g_t, g_r)

            # Serial path: ONE recurrent matmul for both directions.
            g = gx + jnp.dot(h, whh, preferred_element_type=jnp.float32)  # (B, 8H)

            # One sigmoid pass (i/f/o strips; last 2H unused) + tanh only on the
            # 2H-wide g strip.
            sig = jax.nn.sigmoid(g)
            gg = jnp.tanh(g[:, H6:H8])
            i_g = sig[:, 0:H2]
            f_g = sig[:, H2:H4]
            o_g = sig[:, H4:H6]

            c = f_g * c + i_g * gg
            h = o_g * jnp.tanh(c)
            h_steps.append(h)

        # Assemble the time-aligned bidirectional output slab as a value:
        # row block t = [h_fwd(t) | h_bwd(t)] where h_bwd(t) was produced at
        # step T-1-t.  One concatenation after the serial loop, no per-step
        # masked stores.
        out_blocks = [
            jnp.concatenate([h_steps[t][:, 0:H], h_steps[T - 1 - t][:, H:H2]], axis=1)
            for t in range(T)
        ]
        return jnp.concatenate(out_blocks, axis=0)   # (T*BP, 2H)

    # Layer 0: raw input -> bidirectional features (kept as a value, never stored).
    mid = run_layer(x_ref[...], wih0_ref, whh0_ref, b0_ref)
    # Layer 1: layer-0 output -> final output, single slab store.
    out_ref[...] = run_layer(mid, wih1_ref, whh1_ref, b1_ref)


def pack_lstm_params(params, hidden_size):
    """Pack PyTorch-layout LSTM params into the kernel layout. Run ONCE.

    Column layout (width 8H): [i_f|i_b | f_f|f_b | o_f|o_b | g_f|g_b]
    (torch gate order is i, f, g, o; we move g last so sigmoid covers the first
    6H columns and tanh only the last 2H).
    W_hh is block-diagonal over directions: rows 0:H (h_fwd) feed only the fwd
    half of each strip, rows H:2H (h_bwd) only the bwd half.
    """
    H = hidden_size
    gate_perm = (0, 1, 3, 2)   # packed strips: i, f, o, g  (indices into torch order)

    def pack_layer(layer_params):
        (wf_ih, wf_hh, bf_ih, bf_hh) = layer_params[0]
        (wb_ih, wb_hh, bb_ih, bb_hh) = layer_params[1]
        bf = bf_ih + bf_hh
        bb = bb_ih + bb_hh
        zeros_h = jnp.zeros((H, H), jnp.float32)
        wih_cols, whh_cols, b_cols = [], [], []
        for gt in gate_perm:
            r = slice(gt * H, (gt + 1) * H)
            wih_cols += [wf_ih[r].T, wb_ih[r].T]
            whh_cols += [jnp.concatenate([wf_hh[r].T, zeros_h], axis=0),
                         jnp.concatenate([zeros_h, wb_hh[r].T], axis=0)]
            b_cols += [bf[r], bb[r]]
        wih = jnp.concatenate(wih_cols, axis=1).astype(jnp.float32)       # (Din, 8H)
        whh = jnp.concatenate(whh_cols, axis=1).astype(jnp.float32)       # (2H, 8H)
        b = jnp.concatenate(b_cols).reshape(1, 8 * H).astype(jnp.float32)  # (1, 8H)
        return wih, whh, b

    return pack_layer(params[0]) + pack_layer(params[1])


@jax.jit
def lstm_feature_extractor(x, packed):
    """Forward pass of LSTMFeatureExtractor (num_layers=2, bidirectional=True).

    x: (T, B, input_size) float32, time-major (torch batch_first=False).
    packed: output of pack_lstm_params (precomputed once).
    Returns (T, B, 2*hidden_size).
    """
    wih0, whh0, b0, wih1, whh1, b1 = packed
    T, B, Din = x.shape
    H = whh0.shape[0] // 2

    # Pad batch up to a full 8-sublane tile so every per-step access in the
    # kernel is aligned.  Padded rows carry harmless finite junk and are
    # sliced away below (batch rows never mix inside the LSTM).
    BP = ((B + 7) // 8) * 8
    xp = x.astype(jnp.float32)
    if BP != B:
        xp = jnp.pad(xp, ((0, 0), (0, BP - B), (0, 0)))
    x2d = xp.reshape(T * BP, Din)

    kernel = functools.partial(_bilstm2_kernel, seq_len=T, batch_p=BP, hidden=H)
    vmem = pl.BlockSpec(memory_space=pltpu.MemorySpace.VMEM)
    out2d = pl.pallas_call(
        kernel,
        out_shape=jax.ShapeDtypeStruct((T * BP, 2 * H), jnp.float32),
        in_specs=[vmem] * 7,
        out_specs=vmem,
        scratch_shapes=[
            pltpu.VMEM((T * BP, 8 * H), jnp.float32),   # precomputed x @ W_ih + b
        ],
    )(x2d, wih0, whh0, b0, wih1, whh1, b1)

    return out2d.reshape(T, BP, 2 * H)[:, :B, :]


def init_lstm_params(key, input_size, hidden_size, num_layers, bidirectional):
    """Deterministic U(-1/sqrt(H), 1/sqrt(H)) init, matching torch.nn.LSTM."""
    num_dirs = 2 if bidirectional else 1
    k = 1.0 / math.sqrt(hidden_size)
    params = []
    for layer in range(num_layers):
        in_dim = input_size if layer == 0 else hidden_size * num_dirs
        dirs = []
        for _ in range(num_dirs):
            key, k1, k2, k3, k4 = jax.random.split(key, 5)
            w_ih = jax.random.uniform(k1, (4 * hidden_size, in_dim), jnp.float32, -k, k)
            w_hh = jax.random.uniform(k2, (4 * hidden_size, hidden_size), jnp.float32, -k, k)
            b_ih = jax.random.uniform(k3, (4 * hidden_size,), jnp.float32, -k, k)
            b_hh = jax.random.uniform(k4, (4 * hidden_size,), jnp.float32, -k, k)
            dirs.append((w_ih, w_hh, b_ih, b_hh))
        params.append(dirs)
    return params


if __name__ == "__main__":
    # Module config: LSTMFeatureExtractor(input_size=16, hidden_size=32)
    # -> num_layers=2, bidirectional=True, dropout=0.0, proj_size=0
    input_size = 16
    hidden_size = 32
    num_layers = 2
    bidirectional = True

    seq_len = 8
    batch = 2

    key = jax.random.PRNGKey(0)
    key, xk = jax.random.split(key)
    x = jax.random.normal(xk, (seq_len, batch, input_size), jnp.float32)

    params = init_lstm_params(key, input_size, hidden_size, num_layers, bidirectional)
    # Pack weights into kernel layout once, outside the jitted forward.
    packed = jax.tree_util.tree_map(jax.block_until_ready,
                                    pack_lstm_params(params, hidden_size))

    out = lstm_feature_extractor(x, packed)
    out = jax.block_until_ready(out)

    expected_shape = (seq_len, batch, 2 * hidden_size)
    assert out.shape == expected_shape, (out.shape, expected_shape)
    assert bool(jnp.all(jnp.isfinite(out))), "non-finite output"
    print("KERNEL_OK")
</pallas_src>

<mosaic_0001>
module attributes {stable_mosaic.version = 11 : i64} {
  func.func @_bilstm2_kernel(%arg0: memref<64x16xf32, #tpu.memory_space<vmem>>, %arg1: memref<16x256xf32, #tpu.memory_space<vmem>>, %arg2: memref<64x256xf32, #tpu.memory_space<vmem>>, %arg3: memref<1x256xf32, #tpu.memory_space<vmem>>, %arg4: memref<64x256xf32, #tpu.memory_space<vmem>>, %arg5: memref<64x256xf32, #tpu.memory_space<vmem>>, %arg6: memref<1x256xf32, #tpu.memory_space<vmem>>, %arg7: memref<64x64xf32, #tpu.memory_space<vmem>>, %arg8: memref<64x256xf32, #tpu.memory_space<vmem>>) attributes {dimension_semantics = [], scalar_prefetch = 0 : i64, scratch_operands = 1 : i64, tpu.core_type = #tpu.core_type<tc>} {
    %0 = tpu.iota {dimensions = array<i32: 1>} : vector<8x256xi32>
    %c64_i32 = arith.constant 64 : i32
    %c0_i32 = arith.constant 0 : i32
    %1 = arith.cmpi eq, %c64_i32, %c0_i32 : i32
    %c1_i32 = arith.constant 1 : i32
    %2 = arith.select %1, %c1_i32, %c64_i32 : i32
    %3 = vector.broadcast %2 : i32 to vector<8x256xi32>
    %4 = arith.remsi %0, %3 : vector<8x256xi32>
    %c0_i32_0 = arith.constant 0 : i32
    %5 = vector.broadcast %c0_i32_0 : i32 to vector<8x256xi32>
    %6 = arith.cmpi ne, %4, %5 : vector<8x256xi32>
    %c0_i32_1 = arith.constant 0 : i32
    %7 = vector.broadcast %c0_i32_1 : i32 to vector<8x256xi32>
    %8 = arith.cmpi slt, %4, %7 : vector<8x256xi32>
    %c0_i32_2 = arith.constant 0 : i32
    %9 = arith.cmpi slt, %2, %c0_i32_2 : i32
    %10 = vector.broadcast %9 : i1 to vector<8x256xi1>
    %11 = vector.broadcast %10 : vector<8x256xi1> to vector<8x256xi1>
    %12 = arith.xori %8, %11 : vector<8x256xi1>
    %13 = arith.andi %12, %6 : vector<8x256xi1>
    %14 = vector.broadcast %2 : i32 to vector<8x256xi32>
    %15 = arith.addi %4, %14 : vector<8x256xi32>
    %16 = arith.select %13, %15, %4 : vector<8x256xi1>, vector<8x256xi32>
    %c32_i32 = arith.constant 32 : i32
    %17 = vector.broadcast %c32_i32 : i32 to vector<8x256xi32>
    %18 = arith.cmpi slt, %16, %17 : vector<8x256xi32>
    %c0 = arith.constant 0 : index
    %c0_3 = arith.constant 0 : index
    %19 = vector.load %arg0[%c0, %c0_3] : memref<64x16xf32, #tpu.memory_space<vmem>>, vector<64x16xf32>
    %c0_4 = arith.constant 0 : index
    %c0_5 = arith.constant 0 : index
    %20 = vector.load %arg1[%c0_4, %c0_5] : memref<16x256xf32, #tpu.memory_space<vmem>>, vector<16x256xf32>
    %cst = arith.constant dense<0.000000e+00> : vector<64x256xf32>
    %21 = tpu.matmul %19, %20, %cst {dimension_numbers = #tpu.dot_dimension_numbers<[1], [0], [0], [1], [0, 0, 1, 1], [], []>} : vector<64x16xf32>, vector<16x256xf32>, vector<64x256xf32> -> vector<64x256xf32>
    %c0_6 = arith.constant 0 : index
    %c0_7 = arith.constant 0 : index
    %22 = vector.load %arg3[%c0_6, %c0_7] : memref<1x256xf32, #tpu.memory_space<vmem>>, vector<1x256xf32>
    %23 = vector.broadcast %22 : vector<1x256xf32> to vector<64x256xf32>
    %24 = arith.addf %21, %23 : vector<64x256xf32>
    %c0_8 = arith.constant 0 : index
    %c0_9 = arith.constant 0 : index
    %25 = vector.load %arg8[%c0_8, %c0_9] : memref<64x256xf32, #tpu.memory_space<vmem>>, vector<64x256xf32>
    tpu.vector_store %arg8[%c0_8, %c0_9], %24 {strides = array<i32>} : memref<64x256xf32, #tpu.memory_space<vmem>>, vector<64x256xf32>,
    %c0_10 = arith.constant 0 : index
    %c0_11 = arith.constant 0 : index
    %26 = vector.load %arg2[%c0_10, %c0_11] : memref<64x256xf32, #tpu.memory_space<vmem>>, vector<64x256xf32>
    %cst_12 = arith.constant 0.000000e+00 : f32
    %27 = vector.broadcast %cst_12 : f32 to vector<8x64xf32>
    %cst_13 = arith.constant 0.000000e+00 : f32
    %28 = vector.broadcast %cst_13 : f32 to vector<8x64xf32>
    %c0_14 = arith.constant 0 : index
    %c0_15 = arith.constant 0 : index
    %29 = vector.load %arg8[%c0_14, %c0_15] : memref<64x256xf32, #tpu.memory_space<vmem>>, vector<8x256xf32>
    %c56 = arith.constant 56 : index
    %c0_16 = arith.constant 0 : index
    %30 = vector.load %arg8[%c56, %c0_16] : memref<64x256xf32, #tpu.memory_space<vmem>>, vector<8x256xf32>
    %31 = arith.select %18, %29, %30 : vector<8x256xi1>, vector<8x256xf32>
    %cst_17 = arith.constant dense<0.000000e+00> : vector<8x256xf32>
    %32 = tpu.matmul %27, %26, %cst_17 {dimension_numbers = #tpu.dot_dimension_numbers<[1], [0], [0], [1], [0, 0, 1, 1], [], []>} : vector<8x64xf32>, vector<64x256xf32>, vector<8x256xf32> -> vector<8x256xf32>
    %33 = arith.addf %31, %32 : vector<8x256xf32>
    %34 = arith.negf %33 : vector<8x256xf32>
    %35 = math.exp %34 : vector<8x256xf32>
    %cst_18 = arith.constant 1.000000e+00 : f32
    %36 = vector.broadcast %cst_18 : f32 to vector<8x256xf32>
    %37 = arith.addf %36, %35 : vector<8x256xf32>
    %38 = arith.divf %36, %37 : vector<8x256xf32>
    %39 = vector.extract_strided_slice %33 {offsets = [0, 192], sizes = [8, 64], strides = [1, 1]} : vector<8x256xf32> to vector<8x64xf32>
    %40 = math.tanh %39 : vector<8x64xf32>
    %41 = vector.extract_strided_slice %38 {offsets = [0, 0], sizes = [8, 64], strides = [1, 1]} : vector<8x256xf32> to vector<8x64xf32>
    %42 = vector.extract_strided_slice %38 {offsets = [0, 64], sizes = [8, 64], strides = [1, 1]} : vector<8x256xf32> to vector<8x64xf32>
    %43 = vector.extract_strided_slice %38 {offsets = [0, 128], sizes = [8, 64], strides = [1, 1]} : vector<8x256xf32> to vector<8x64xf32>
    %44 = arith.mulf %42, %28 : vector<8x64xf32>
    %45 = arith.mulf %41, %40 : vector<8x64xf32>
    %46 = arith.addf %44, %45 : vector<8x64xf32>
    %47 = math.tanh %46 : vector<8x64xf32>
    %48 = arith.mulf %43, %47 : vector<8x64xf32>
    %c8 = arith.constant 8 : index
    %c0_19 = arith.constant 0 : index
    %49 = vector.load %arg8[%c8, %c0_19] : memref<64x256xf32, #tpu.memory_space<vmem>>, vector<8x256xf32>
    %c48 = arith.constant 48 : index
    %c0_20 = arith.constant 0 : index
    %50 = vector.load %arg8[%c48, %c0_20] : memref<64x256xf32, #tpu.memory_space<vmem>>, vector<8x256xf32>
    %51 = arith.select %18, %49, %50 : vector<8x256xi1>, vector<8x256xf32>
    %cst_21 = arith.constant dense<0.000000e+00> : vector<8x256xf32>
    %52 = tpu.matmul %48, %26, %cst_21 {dimension_numbers = #tpu.dot_dimension_numbers<[1], [0], [0], [1], [0, 0, 1, 1], [], []>} : vector<8x64xf32>, vector<64x256xf32>, vector<8x256xf32> -> vector<8x256xf32>
    %53 = arith.addf %51, %52 : vector<8x256xf32>
    %54 = arith.negf %53 : vector<8x256xf32>
    %55 = math.exp %54 : vector<8x256xf32>
    %cst_22 = arith.constant 1.000000e+00 : f32
    %56 = vector.broadcast %cst_22 : f32 to vector<8x256xf32>
    %57 = arith.addf %56, %55 : vector<8x256xf32>
    %58 = arith.divf %56, %57 : vector<8x256xf32>
    %59 = vector.extract_strided_slice %53 {offsets = [0, 192], sizes = [8, 64], strides = [1, 1]} : vector<8x256xf32> to vector<8x64xf32>
    %60 = math.tanh %59 : vector<8x64xf32>
    %61 = vector.extract_strided_slice %58 {offsets = [0, 0], sizes = [8, 64], strides = [1, 1]} : vector<8x256xf32> to vector<8x64xf32>
    %62 = vector.extract_strided_slice %58 {offsets = [0, 64], sizes = [8, 64], strides = [1, 1]} : vector<8x256xf32> to vector<8x64xf32>
    %63 = vector.extract_strided_slice %58 {offsets = [0, 128], sizes = [8, 64], strides = [1, 1]} : vector<8x256xf32> to vector<8x64xf32>
    %64 = arith.mulf %62, %46 : vector<8x64xf32>
    %65 = arith.mulf %61, %60 : vector<8x64xf32>
    %66 = arith.addf %64, %65 : vector<8x64xf32>
    %67 = math.tanh %66 : vector<8x64xf32>
    %68 = arith.mulf %63, %67 : vector<8x64xf32>
    %c16 = arith.constant 16 : index
    %c0_23 = arith.constant 0 : index
    %69 = vector.load %arg8[%c16, %c0_23] : memref<64x256xf32, #tpu.memory_space<vmem>>, vector<8x256xf32>
    %c40 = arith.constant 40 : index
    %c0_24 = arith.constant 0 : index
    %70 = vector.load %arg8[%c40, %c0_24] : memref<64x256xf32, #tpu.memory_space<vmem>>, vector<8x256xf32>
    %71 = arith.select %18, %69, %70 : vector<8x256xi1>, vector<8x256xf32>
    %cst_25 = arith.constant dense<0.000000e+00> : vector<8x256xf32>
    %72 = tpu.matmul %68, %26, %cst_25 {dimension_numbers = #tpu.dot_dimension_numbers<[1], [0], [0], [1], [0, 0, 1, 1], [], []>} : vector<8x64xf32>, vector<64x256xf32>, vector<8x256xf32> -> vector<8x256xf32>
    %73 = arith.addf %71, %72 : vector<8x256xf32>
    %74 = arith.negf %73 : vector<8x256xf32>
    %75 = math.exp %74 : vector<8x256xf32>
    %cst_26 = arith.constant 1.000000e+00 : f32
    %76 = vector.broadcast %cst_26 : f32 to vector<8x256xf32>
    %77 = arith.addf %76, %75 : vector<8x256xf32>
    %78 = arith.divf %76, %77 : vector<8x256xf32>
    %79 = vector.extract_strided_slice %73 {offsets = [0, 192], sizes = [8, 64], strides = [1, 1]} : vector<8x256xf32> to vector<8x64xf32>
    %80 = math.tanh %79 : vector<8x64xf32>
    %81 = vector.extract_strided_slice %78 {offsets = [0, 0], sizes = [8, 64], strides = [1, 1]} : vector<8x256xf32> to vector<8x64xf32>
    %82 = vector.extract_strided_slice %78 {offsets = [0, 64], sizes = [8, 64], strides = [1, 1]} : vector<8x256xf32> to vector<8x64xf32>
    %83 = vector.extract_strided_slice %78 {offsets = [0, 128], sizes = [8, 64], strides = [1, 1]} : vector<8x256xf32> to vector<8x64xf32>
    %84 = arith.mulf %82, %66 : vector<8x64xf32>
    %85 = arith.mulf %81, %80 : vector<8x64xf32>
    %86 = arith.addf %84, %85 : vector<8x64xf32>
    %87 = math.tanh %86 : vector<8x64xf32>
    %88 = arith.mulf %83, %87 : vector<8x64xf32>
    %c24 = arith.constant 24 : index
    %c0_27 = arith.constant 0 : index
    %89 = vector.load %arg8[%c24, %c0_27] : memref<64x256xf32, #tpu.memory_space<vmem>>, vector<8x256xf32>
    %c32 = arith.constant 32 : index
    %c0_28 = arith.constant 0 : index
    %90 = vector.load %arg8[%c32, %c0_28] : memref<64x256xf32, #tpu.memory_space<vmem>>, vector<8x256xf32>
    %91 = arith.select %18, %89, %90 : vector<8x256xi1>, vector<8x256xf32>
    %cst_29 = arith.constant dense<0.000000e+00> : vector<8x256xf32>
    %92 = tpu.matmul %88, %26, %cst_29 {dimension_numbers = #tpu.dot_dimension_numbers<[1], [0], [0], [1], [0, 0, 1, 1], [], []>} : vector<8x64xf32>, vector<64x256xf32>, vector<8x256xf32> -> vector<8x256xf32>
    %93 = arith.addf %91, %92 : vector<8x256xf32>
    %94 = arith.negf %93 : vector<8x256xf32>
    %95 = math.exp %94 : vector<8x256xf32>
    %cst_30 = arith.constant 1.000000e+00 : f32
    %96 = vector.broadcast %cst_30 : f32 to vector<8x256xf32>
    %97 = arith.addf %96, %95 : vector<8x256xf32>
    %98 = arith.divf %96, %97 : vector<8x256xf32>
    %99 = vector.extract_strided_slice %93 {offsets = [0, 192], sizes = [8, 64], strides = [1, 1]} : vector<8x256xf32> to vector<8x64xf32>
    %100 = math.tanh %99 : vector<8x64xf32>
    %101 = vector.extract_strided_slice %98 {offsets = [0, 0], sizes = [8, 64], strides = [1, 1]} : vector<8x256xf32> to vector<8x64xf32>
    %102 = vector.extract_strided_slice %98 {offsets = [0, 64], sizes = [8, 64], strides = [1, 1]} : vector<8x256xf32> to vector<8x64xf32>
    %103 = vector.extract_strided_slice %98 {offsets = [0, 128], sizes = [8, 64], strides = [1, 1]} : vector<8x256xf32> to vector<8x64xf32>
    %104 = arith.mulf %102, %86 : vector<8x64xf32>
    %105 = arith.mulf %101, %100 : vector<8x64xf32>
    %106 = arith.addf %104, %105 : vector<8x64xf32>
    %107 = math.tanh %106 : vector<8x64xf32>
    %108 = arith.mulf %103, %107 : vector<8x64xf32>
    %c32_31 = arith.constant 32 : index
    %c0_32 = arith.constant 0 : index
    %109 = vector.load %arg8[%c32_31, %c0_32] : memref<64x256xf32, #tpu.memory_space<vmem>>, vector<8x256xf32>
    %c24_33 = arith.constant 24 : index
    %c0_34 = arith.constant 0 : index
    %110 = vector.load %arg8[%c24_33, %c0_34] : memref<64x256xf32, #tpu.memory_space<vmem>>, vector<8x256xf32>
    %111 = arith.select %18, %109, %110 : vector<8x256xi1>, vector<8x256xf32>
    %cst_35 = arith.constant dense<0.000000e+00> : vector<8x256xf32>
    %112 = tpu.matmul %108, %26, %cst_35 {dimension_numbers = #tpu.dot_dimension_numbers<[1], [0], [0], [1], [0, 0, 1, 1], [], []>} : vector<8x64xf32>, vector<64x256xf32>, vector<8x256xf32> -> vector<8x256xf32>
    %113 = arith.addf %111, %112 : vector<8x256xf32>
    %114 = arith.negf %113 : vector<8x256xf32>
    %115 = math.exp %114 : vector<8x256xf32>
    %cst_36 = arith.constant 1.000000e+00 : f32
    %116 = vector.broadcast %cst_36 : f32 to vector<8x256xf32>
    %117 = arith.addf %116, %115 : vector<8x256xf32>
    %118 = arith.divf %116, %117 : vector<8x256xf32>
    %119 = vector.extract_strided_slice %113 {offsets = [0, 192], sizes = [8, 64], strides = [1, 1]} : vector<8x256xf32> to vector<8x64xf32>
    %120 = math.tanh %119 : vector<8x64xf32>
    %121 = vector.extract_strided_slice %118 {offsets = [0, 0], sizes = [8, 64], strides = [1, 1]} : vector<8x256xf32> to vector<8x64xf32>
    %122 = vector.extract_strided_slice %118 {offsets = [0, 64], sizes = [8, 64], strides = [1, 1]} : vector<8x256xf32> to vector<8x64xf32>
    %123 = vector.extract_strided_slice %118 {offsets = [0, 128], sizes = [8, 64], strides = [1, 1]} : vector<8x256xf32> to vector<8x64xf32>
    %124 = arith.mulf %122, %106 : vector<8x64xf32>
    %125 = arith.mulf %121, %120 : vector<8x64xf32>
    %126 = arith.addf %124, %125 : vector<8x64xf32>
    %127 = math.tanh %126 : vector<8x64xf32>
    %128 = arith.mulf %123, %127 : vector<8x64xf32>
    %c40_37 = arith.constant 40 : index
    %c0_38 = arith.constant 0 : index
    %129 = vector.load %arg8[%c40_37, %c0_38] : memref<64x256xf32, #tpu.memory_space<vmem>>, vector<8x256xf32>
    %c16_39 = arith.constant 16 : index
    %c0_40 = arith.constant 0 : index
    %130 = vector.load %arg8[%c16_39, %c0_40] : memref<64x256xf32, #tpu.memory_space<vmem>>, vector<8x256xf32>
    %131 = arith.select %18, %129, %130 : vector<8x256xi1>, vector<8x256xf32>
    %cst_41 = arith.constant dense<0.000000e+00> : vector<8x256xf32>
    %132 = tpu.matmul %128, %26, %cst_41 {dimension_numbers = #tpu.dot_dimension_numbers<[1], [0], [0], [1], [0, 0, 1, 1], [], []>} : vector<8x64xf32>, vector<64x256xf32>, vector<8x256xf32> -> vector<8x256xf32>
    %133 = arith.addf %131, %132 : vector<8x256xf32>
    %134 = arith.negf %133 : vector<8x256xf32>
    %135 = math.exp %134 : vector<8x256xf32>
    %cst_42 = arith.constant 1.000000e+00 : f32
    %136 = vector.broadcast %cst_42 : f32 to vector<8x256xf32>
    %137 = arith.addf %136, %135 : vector<8x256xf32>
    %138 = arith.divf %136, %137 : vector<8x256xf32>
    %139 = vector.extract_strided_slice %133 {offsets = [0, 192], sizes = [8, 64], strides = [1, 1]} : vector<8x256xf32> to vector<8x64xf32>
    %140 = math.tanh %139 : vector<8x64xf32>
    %141 = vector.extract_strided_slice %138 {offsets = [0, 0], sizes = [8, 64], strides = [1, 1]} : vector<8x256xf32> to vector<8x64xf32>
    %142 = vector.extract_strided_slice %138 {offsets = [0, 64], sizes = [8, 64], strides = [1, 1]} : vector<8x256xf32> to vector<8x64xf32>
    %143 = vector.extract_strided_slice %138 {offsets = [0, 128], sizes = [8, 64], strides = [1, 1]} : vector<8x256xf32> to vector<8x64xf32>
    %144 = arith.mulf %142, %126 : vector<8x64xf32>
    %145 = arith.mulf %141, %140 : vector<8x64xf32>
    %146 = arith.addf %144, %145 : vector<8x64xf32>
    %147 = math.tanh %146 : vector<8x64xf32>
    %148 = arith.mulf %143, %147 : vector<8x64xf32>
    %c48_43 = arith.constant 48 : index
    %c0_44 = arith.constant 0 : index
    %149 = vector.load %arg8[%c48_43, %c0_44] : memref<64x256xf32, #tpu.memory_space<vmem>>, vector<8x256xf32>
    %c8_45 = arith.constant 8 : index
    %c0_46 = arith.constant 0 : index
    %150 = vector.load %arg8[%c8_45, %c0_46] : memref<64x256xf32, #tpu.memory_space<vmem>>, vector<8x256xf32>
    %151 = arith.select %18, %149, %150 : vector<8x256xi1>, vector<8x256xf32>
    %cst_47 = arith.constant dense<0.000000e+00> : vector<8x256xf32>
    %152 = tpu.matmul %148, %26, %cst_47 {dimension_numbers = #tpu.dot_dimension_numbers<[1], [0], [0], [1], [0, 0, 1, 1], [], []>} : vector<8x64xf32>, vector<64x256xf32>, vector<8x256xf32> -> vector<8x256xf32>
    %153 = arith.addf %151, %152 : vector<8x256xf32>
    %154 = arith.negf %153 : vector<8x256xf32>
    %155 = math.exp %154 : vector<8x256xf32>
    %cst_48 = arith.constant 1.000000e+00 : f32
    %156 = vector.broadcast %cst_48 : f32 to vector<8x256xf32>
    %157 = arith.addf %156, %155 : vector<8x256xf32>
    %158 = arith.divf %156, %157 : vector<8x256xf32>
    %159 = vector.extract_strided_slice %153 {offsets = [0, 192], sizes = [8, 64], strides = [1, 1]} : vector<8x256xf32> to vector<8x64xf32>
    %160 = math.tanh %159 : vector<8x64xf32>
    %161 = vector.extract_strided_slice %158 {offsets = [0, 0], sizes = [8, 64], strides = [1, 1]} : vector<8x256xf32> to vector<8x64xf32>
    %162 = vector.extract_strided_slice %158 {offsets = [0, 64], sizes = [8, 64], strides = [1, 1]} : vector<8x256xf32> to vector<8x64xf32>
    %163 = vector.extract_strided_slice %158 {offsets = [0, 128], sizes = [8, 64], strides = [1, 1]} : vector<8x256xf32> to vector<8x64xf32>
    %164 = arith.mulf %162, %146 : vector<8x64xf32>
    %165 = arith.mulf %161, %160 : vector<8x64xf32>
    %166 = arith.addf %164, %165 : vector<8x64xf32>
    %167 = math.tanh %166 : vector<8x64xf32>
    %168 = arith.mulf %163, %167 : vector<8x64xf32>
    %c56_49 = arith.constant 56 : index
    %c0_50 = arith.constant 0 : index
    %169 = vector.load %arg8[%c56_49, %c0_50] : memref<64x256xf32, #tpu.memory_space<vmem>>, vector<8x256xf32>
    %c0_51 = arith.constant 0 : index
    %c0_52 = arith.constant 0 : index
    %170 = vector.load %arg8[%c0_51, %c0_52] : memref<64x256xf32, #tpu.memory_space<vmem>>, vector<8x256xf32>
    %171 = arith.select %18, %169, %170 : vector<8x256xi1>, vector<8x256xf32>
    %cst_53 = arith.constant dense<0.000000e+00> : vector<8x256xf32>
    %172 = tpu.matmul %168, %26, %cst_53 {dimension_numbers = #tpu.dot_dimension_numbers<[1], [0], [0], [1], [0, 0, 1, 1], [], []>} : vector<8x64xf32>, vector<64x256xf32>, vector<8x256xf32> -> vector<8x256xf32>
    %173 = arith.addf %171, %172 : vector<8x256xf32>
    %174 = arith.negf %173 : vector<8x256xf32>
    %175 = math.exp %174 : vector<8x256xf32>
    %cst_54 = arith.constant 1.000000e+00 : f32
    %176 = vector.broadcast %cst_54 : f32 to vector<8x256xf32>
    %177 = arith.addf %176, %175 : vector<8x256xf32>
    %178 = arith.divf %176, %177 : vector<8x256xf32>
    %179 = vector.extract_strided_slice %173 {offsets = [0, 192], sizes = [8, 64], strides = [1, 1]} : vector<8x256xf32> to vector<8x64xf32>
    %180 = math.tanh %179 : vector<8x64xf32>
    %181 = vector.extract_strided_slice %178 {offsets = [0, 0], sizes = [8, 64], strides = [1, 1]} : vector<8x256xf32> to vector<8x64xf32>
    %182 = vector.extract_strided_slice %178 {offsets = [0, 64], sizes = [8, 64], strides = [1, 1]} : vector<8x256xf32> to vector<8x64xf32>
    %183 = vector.extract_strided_slice %178 {offsets = [0, 128], sizes = [8, 64], strides = [1, 1]} : vector<8x256xf32> to vector<8x64xf32>
    %184 = arith.mulf %182, %166 : vector<8x64xf32>
    %185 = arith.mulf %181, %180 : vector<8x64xf32>
    %186 = arith.addf %184, %185 : vector<8x64xf32>
    %187 = math.tanh %186 : vector<8x64xf32>
    %188 = arith.mulf %183, %187 : vector<8x64xf32>
    %189 = vector.extract_strided_slice %48 {offsets = [0, 0], sizes = [8, 32], strides = [1, 1]} : vector<8x64xf32> to vector<8x32xf32>
    %190 = vector.extract_strided_slice %188 {offsets = [0, 32], sizes = [8, 32], strides = [1, 1]} : vector<8x64xf32> to vector<8x32xf32>
    %191 = tpu.concatenate %189, %190 in 1 : vector<8x32xf32>, vector<8x32xf32> -> vector<8x64xf32>
    %192 = vector.extract_strided_slice %68 {offsets = [0, 0], sizes = [8, 32], strides = [1, 1]} : vector<8x64xf32> to vector<8x32xf32>
    %193 = vector.extract_strided_slice %168 {offsets = [0, 32], sizes = [8, 32], strides = [1, 1]} : vector<8x64xf32> to vector<8x32xf32>
    %194 = tpu.concatenate %192, %193 in 1 : vector<8x32xf32>, vector<8x32xf32> -> vector<8x64xf32>
    %195 = vector.extract_strided_slice %88 {offsets = [0, 0], sizes = [8, 32], strides = [1, 1]} : vector<8x64xf32> to vector<8x32xf32>
    %196 = vector.extract_strided_slice %148 {offsets = [0, 32], sizes = [8, 32], strides = [1, 1]} : vector<8x64xf32> to vector<8x32xf32>
    %197 = tpu.concatenate %195, %196 in 1 : vector<8x32xf32>, vector<8x32xf32> -> vector<8x64xf32>
    %198 = vector.extract_strided_slice %108 {offsets = [0, 0], sizes = [8, 32], strides = [1, 1]} : vector<8x64xf32> to vector<8x32xf32>
    %199 = vector.extract_strided_slice %128 {offsets = [0, 32], sizes = [8, 32], strides = [1, 1]} : vector<8x64xf32> to vector<8x32xf32>
    %200 = tpu.concatenate %198, %199 in 1 : vector<8x32xf32>, vector<8x32xf32> -> vector<8x64xf32>
    %201 = vector.extract_strided_slice %128 {offsets = [0, 0], sizes = [8, 32], strides = [1, 1]} : vector<8x64xf32> to vector<8x32xf32>
    %202 = vector.extract_strided_slice %108 {offsets = [0, 32], sizes = [8, 32], strides = [1, 1]} : vector<8x64xf32> to vector<8x32xf32>
    %203 = tpu.concatenate %201, %202 in 1 : vector<8x32xf32>, vector<8x32xf32> -> vector<8x64xf32>
    %204 = vector.extract_strided_slice %148 {offsets = [0, 0], sizes = [8, 32], strides = [1, 1]} : vector<8x64xf32> to vector<8x32xf32>
    %205 = vector.extract_strided_slice %88 {offsets = [0, 32], sizes = [8, 32], strides = [1, 1]} : vector<8x64xf32> to vector<8x32xf32>
    %206 = tpu.concatenate %204, %205 in 1 : vector<8x32xf32>, vector<8x32xf32> -> vector<8x64xf32>
    %207 = vector.extract_strided_slice %168 {offsets = [0, 0], sizes = [8, 32], strides = [1, 1]} : vector<8x64xf32> to vector<8x32xf32>
    %208 = vector.extract_strided_slice %68 {offsets = [0, 32], sizes = [8, 32], strides = [1, 1]} : vector<8x64xf32> to vector<8x32xf32>
    %209 = tpu.concatenate %207, %208 in 1 : vector<8x32xf32>, vector<8x32xf32> -> vector<8x64xf32>
    %210 = vector.extract_strided_slice %188 {offsets = [0, 0], sizes = [8, 32], strides = [1, 1]} : vector<8x64xf32> to vector<8x32xf32>
    %211 = vector.extract_strided_slice %48 {offsets = [0, 32], sizes = [8, 32], strides = [1, 1]} : vector<8x64xf32> to vector<8x32xf32>
    %212 = tpu.concatenate %210, %211 in 1 : vector<8x32xf32>, vector<8x32xf32> -> vector<8x64xf32>
    %213 = tpu.concatenate %191, %194, %197, %200, %203, %206, %209, %212 in 0 : vector<8x64xf32>, vector<8x64xf32>, vector<8x64xf32>, vector<8x64xf32>, vector<8x64xf32>, vector<8x64xf32>, vector<8x64xf32>, vector<8x64xf32> -> vector<64x64xf32>
    %c0_55 = arith.constant 0 : index
    %c0_56 = arith.constant 0 : index
    %214 = vector.load %arg4[%c0_55, %c0_56] : memref<64x256xf32, #tpu.memory_space<vmem>>, vector<64x256xf32>
    %cst_57 = arith.constant dense<0.000000e+00> : vector<64x256xf32>
    %215 = tpu.matmul %213, %214, %cst_57 {dimension_numbers = #tpu.dot_dimension_numbers<[1], [0], [0], [1], [0, 0, 1, 1], [], []>} : vector<64x64xf32>, vector<64x256xf32>, vector<64x256xf32> -> vector<64x256xf32>
    %c0_58 = arith.constant 0 : index
    %c0_59 = arith.constant 0 : index
    %216 = vector.load %arg6[%c0_58, %c0_59] : memref<1x256xf32, #tpu.memory_space<vmem>>, vector<1x256xf32>
    %217 = vector.broadcast %216 : vector<1x256xf32> to vector<64x256xf32>
    %218 = arith.addf %215, %217 : vector<64x256xf32>
    %c0_60 = arith.constant 0 : index
    %c0_61 = arith.constant 0 : index
    %219 = vector.load %arg8[%c0_60, %c0_61] : memref<64x256xf32, #tpu.memory_space<vmem>>, vector<64x256xf32>
    tpu.vector_store %arg8[%c0_60, %c0_61], %218 {strides = array<i32>} : memref<64x256xf32, #tpu.memory_space<vmem>>, vector<64x256xf32>,
    %c0_62 = arith.constant 0 : index
    %c0_63 = arith.constant 0 : index
    %220 = vector.load %arg5[%c0_62, %c0_63] : memref<64x256xf32, #tpu.memory_space<vmem>>, vector<64x256xf32>
    %cst_64 = arith.constant 0.000000e+00 : f32
    %221 = vector.broadcast %cst_64 : f32 to vector<8x64xf32>
    %cst_65 = arith.constant 0.000000e+00 : f32
    %222 = vector.broadcast %cst_65 : f32 to vector<8x64xf32>
    %c0_66 = arith.constant 0 : index
    %c0_67 = arith.constant 0 : index
    %223 = vector.load %arg8[%c0_66, %c0_67] : memref<64x256xf32, #tpu.memory_space<vmem>>, vector<8x256xf32>
    %c56_68 = arith.constant 56 : index
    %c0_69 = arith.constant 0 : index
    %224 = vector.load %arg8[%c56_68, %c0_69] : memref<64x256xf32, #tpu.memory_space<vmem>>, vector<8x256xf32>
    %225 = arith.select %18, %223, %224 : vector<8x256xi1>, vector<8x256xf32>
    %cst_70 = arith.constant dense<0.000000e+00> : vector<8x256xf32>
    %226 = tpu.matmul %221, %220, %cst_70 {dimension_numbers = #tpu.dot_dimension_numbers<[1], [0], [0], [1], [0, 0, 1, 1], [], []>} : vector<8x64xf32>, vector<64x256xf32>, vector<8x256xf32> -> vector<8x256xf32>
    %227 = arith.addf %225, %226 : vector<8x256xf32>
    %228 = arith.negf %227 : vector<8x256xf32>
    %229 = math.exp %228 : vector<8x256xf32>
    %cst_71 = arith.constant 1.000000e+00 : f32
    %230 = vector.broadcast %cst_71 : f32 to vector<8x256xf32>
    %231 = arith.addf %230, %229 : vector<8x256xf32>
    %232 = arith.divf %230, %231 : vector<8x256xf32>
    %233 = vector.extract_strided_slice %227 {offsets = [0, 192], sizes = [8, 64], strides = [1, 1]} : vector<8x256xf32> to vector<8x64xf32>
    %234 = math.tanh %233 : vector<8x64xf32>
    %235 = vector.extract_strided_slice %232 {offsets = [0, 0], sizes = [8, 64], strides = [1, 1]} : vector<8x256xf32> to vector<8x64xf32>
    %236 = vector.extract_strided_slice %232 {offsets = [0, 64], sizes = [8, 64], strides = [1, 1]} : vector<8x256xf32> to vector<8x64xf32>
    %237 = vector.extract_strided_slice %232 {offsets = [0, 128], sizes = [8, 64], strides = [1, 1]} : vector<8x256xf32> to vector<8x64xf32>
    %238 = arith.mulf %236, %222 : vector<8x64xf32>
    %239 = arith.mulf %235, %234 : vector<8x64xf32>
    %240 = arith.addf %238, %239 : vector<8x64xf32>
    %241 = math.tanh %240 : vector<8x64xf32>
    %242 = arith.mulf %237, %241 : vector<8x64xf32>
    %c8_72 = arith.constant 8 : index
    %c0_73 = arith.constant 0 : index
    %243 = vector.load %arg8[%c8_72, %c0_73] : memref<64x256xf32, #tpu.memory_space<vmem>>, vector<8x256xf32>
    %c48_74 = arith.constant 48 : index
    %c0_75 = arith.constant 0 : index
    %244 = vector.load %arg8[%c48_74, %c0_75] : memref<64x256xf32, #tpu.memory_space<vmem>>, vector<8x256xf32>
    %245 = arith.select %18, %243, %244 : vector<8x256xi1>, vector<8x256xf32>
    %cst_76 = arith.constant dense<0.000000e+00> : vector<8x256xf32>
    %246 = tpu.matmul %242, %220, %cst_76 {dimension_numbers = #tpu.dot_dimension_numbers<[1], [0], [0], [1], [0, 0, 1, 1], [], []>} : vector<8x64xf32>, vector<64x256xf32>, vector<8x256xf32> -> vector<8x256xf32>
    %247 = arith.addf %245, %246 : vector<8x256xf32>
    %248 = arith.negf %247 : vector<8x256xf32>
    %249 = math.exp %248 : vector<8x256xf32>
    %cst_77 = arith.constant 1.000000e+00 : f32
    %250 = vector.broadcast %cst_77 : f32 to vector<8x256xf32>
    %251 = arith.addf %250, %249 : vector<8x256xf32>
    %252 = arith.divf %250, %251 : vector<8x256xf32>
    %253 = vector.extract_strided_slice %247 {offsets = [0, 192], sizes = [8, 64], strides = [1, 1]} : vector<8x256xf32> to vector<8x64xf32>
    %254 = math.tanh %253 : vector<8x64xf32>
    %255 = vector.extract_strided_slice %252 {offsets = [0, 0], sizes = [8, 64], strides = [1, 1]} : vector<8x256xf32> to vector<8x64xf32>
    %256 = vector.extract_strided_slice %252 {offsets = [0, 64], sizes = [8, 64], strides = [1, 1]} : vector<8x256xf32> to vector<8x64xf32>
    %257 = vector.extract_strided_slice %252 {offsets = [0, 128], sizes = [8, 64], strides = [1, 1]} : vector<8x256xf32> to vector<8x64xf32>
    %258 = arith.mulf %256, %240 : vector<8x64xf32>
    %259 = arith.mulf %255, %254 : vector<8x64xf32>
    %260 = arith.addf %258, %259 : vector<8x64xf32>
    %261 = math.tanh %260 : vector<8x64xf32>
    %262 = arith.mulf %257, %261 : vector<8x64xf32>
    %c16_78 = arith.constant 16 : index
    %c0_79 = arith.constant 0 : index
    %263 = vector.load %arg8[%c16_78, %c0_79] : memref<64x256xf32, #tpu.memory_space<vmem>>, vector<8x256xf32>
    %c40_80 = arith.constant 40 : index
    %c0_81 = arith.constant 0 : index
    %264 = vector.load %arg8[%c40_80, %c0_81] : memref<64x256xf32, #tpu.memory_space<vmem>>, vector<8x256xf32>
    %265 = arith.select %18, %263, %264 : vector<8x256xi1>, vector<8x256xf32>
    %cst_82 = arith.constant dense<0.000000e+00> : vector<8x256xf32>
    %266 = tpu.matmul %262, %220, %cst_82 {dimension_numbers = #tpu.dot_dimension_numbers<[1], [0], [0], [1], [0, 0, 1, 1], [], []>} : vector<8x64xf32>, vector<64x256xf32>, vector<8x256xf32> -> vector<8x256xf32>
    %267 = arith.addf %265, %266 : vector<8x256xf32>
    %268 = arith.negf %267 : vector<8x256xf32>
    %269 = math.exp %268 : vector<8x256xf32>
    %cst_83 = arith.constant 1.000000e+00 : f32
    %270 = vector.broadcast %cst_83 : f32 to vector<8x256xf32>
    %271 = arith.addf %270, %269 : vector<8x256xf32>
    %272 = arith.divf %270, %271 : vector<8x256xf32>
    %273 = vector.extract_strided_slice %267 {offsets = [0, 192], sizes = [8, 64], strides = [1, 1]} : vector<8x256xf32> to vector<8x64xf32>
    %274 = math.tanh %273 : vector<8x64xf32>
    %275 = vector.extract_strided_slice %272 {offsets = [0, 0], sizes = [8, 64], strides = [1, 1]} : vector<8x256xf32> to vector<8x64xf32>
    %276 = vector.extract_strided_slice %272 {offsets = [0, 64], sizes = [8, 64], strides = [1, 1]} : vector<8x256xf32> to vector<8x64xf32>
    %277 = vector.extract_strided_slice %272 {offsets = [0, 128], sizes = [8, 64], strides = [1, 1]} : vector<8x256xf32> to vector<8x64xf32>
    %278 = arith.mulf %276, %260 : vector<8x64xf32>
    %279 = arith.mulf %275, %274 : vector<8x64xf32>
    %280 = arith.addf %278, %279 : vector<8x64xf32>
    %281 = math.tanh %280 : vector<8x64xf32>
    %282 = arith.mulf %277, %281 : vector<8x64xf32>
    %c24_84 = arith.constant 24 : index
    %c0_85 = arith.constant 0 : index
    %283 = vector.load %arg8[%c24_84, %c0_85] : memref<64x256xf32, #tpu.memory_space<vmem>>, vector<8x256xf32>
    %c32_86 = arith.constant 32 : index
    %c0_87 = arith.constant 0 : index
    %284 = vector.load %arg8[%c32_86, %c0_87] : memref<64x256xf32, #tpu.memory_space<vmem>>, vector<8x256xf32>
    %285 = arith.select %18, %283, %284 : vector<8x256xi1>, vector<8x256xf32>
    %cst_88 = arith.constant dense<0.000000e+00> : vector<8x256xf32>
    %286 = tpu.matmul %282, %220, %cst_88 {dimension_numbers = #tpu.dot_dimension_numbers<[1], [0], [0], [1], [0, 0, 1, 1], [], []>} : vector<8x64xf32>, vector<64x256xf32>, vector<8x256xf32> -> vector<8x256xf32>
    %287 = arith.addf %285, %286 : vector<8x256xf32>
    %288 = arith.negf %287 : vector<8x256xf32>
    %289 = math.exp %288 : vector<8x256xf32>
    %cst_89 = arith.constant 1.000000e+00 : f32
    %290 = vector.broadcast %cst_89 : f32 to vector<8x256xf32>
    %291 = arith.addf %290, %289 : vector<8x256xf32>
    %292 = arith.divf %290, %291 : vector<8x256xf32>
    %293 = vector.extract_strided_slice %287 {offsets = [0, 192], sizes = [8, 64], strides = [1, 1]} : vector<8x256xf32> to vector<8x64xf32>
    %294 = math.tanh %293 : vector<8x64xf32>
    %295 = vector.extract_strided_slice %292 {offsets = [0, 0], sizes = [8, 64], strides = [1, 1]} : vector<8x256xf32> to vector<8x64xf32>
    %296 = vector.extract_strided_slice %292 {offsets = [0, 64], sizes = [8, 64], strides = [1, 1]} : vector<8x256xf32> to vector<8x64xf32>
    %297 = vector.extract_strided_slice %292 {offsets = [0, 128], sizes = [8, 64], strides = [1, 1]} : vector<8x256xf32> to vector<8x64xf32>
    %298 = arith.mulf %296, %280 : vector<8x64xf32>
    %299 = arith.mulf %295, %294 : vector<8x64xf32>
    %300 = arith.addf %298, %299 : vector<8x64xf32>
    %301 = math.tanh %300 : vector<8x64xf32>
    %302 = arith.mulf %297, %301 : vector<8x64xf32>
    %c32_90 = arith.constant 32 : index
    %c0_91 = arith.constant 0 : index
    %303 = vector.load %arg8[%c32_90, %c0_91] : memref<64x256xf32, #tpu.memory_space<vmem>>, vector<8x256xf32>
    %c24_92 = arith.constant 24 : index
    %c0_93 = arith.constant 0 : index
    %304 = vector.load %arg8[%c24_92, %c0_93] : memref<64x256xf32, #tpu.memory_space<vmem>>, vector<8x256xf32>
    %305 = arith.select %18, %303, %304 : vector<8x256xi1>, vector<8x256xf32>
    %cst_94 = arith.constant dense<0.000000e+00> : vector<8x256xf32>
    %306 = tpu.matmul %302, %220, %cst_94 {dimension_numbers = #tpu.dot_dimension_numbers<[1], [0], [0], [1], [0, 0, 1, 1], [], []>} : vector<8x64xf32>, vector<64x256xf32>, vector<8x256xf32> -> vector<8x256xf32>
    %307 = arith.addf %305, %306 : vector<8x256xf32>
    %308 = arith.negf %307 : vector<8x256xf32>
    %309 = math.exp %308 : vector<8x256xf32>
    %cst_95 = arith.constant 1.000000e+00 : f32
    %310 = vector.broadcast %cst_95 : f32 to vector<8x256xf32>
    %311 = arith.addf %310, %309 : vector<8x256xf32>
    %312 = arith.divf %310, %311 : vector<8x256xf32>
    %313 = vector.extract_strided_slice %307 {offsets = [0, 192], sizes = [8, 64], strides = [1, 1]} : vector<8x256xf32> to vector<8x64xf32>
    %314 = math.tanh %313 : vector<8x64xf32>
    %315 = vector.extract_strided_slice %312 {offsets = [0, 0], sizes = [8, 64], strides = [1, 1]} : vector<8x256xf32> to vector<8x64xf32>
    %316 = vector.extract_strided_slice %312 {offsets = [0, 64], sizes = [8, 64], strides = [1, 1]} : vector<8x256xf32> to vector<8x64xf32>
    %317 = vector.extract_strided_slice %312 {offsets = [0, 128], sizes = [8, 64], strides = [1, 1]} : vector<8x256xf32> to vector<8x64xf32>
    %318 = arith.mulf %316, %300 : vector<8x64xf32>
    %319 = arith.mulf %315, %314 : vector<8x64xf32>
    %320 = arith.addf %318, %319 : vector<8x64xf32>
    %321 = math.tanh %320 : vector<8x64xf32>
    %322 = arith.mulf %317, %321 : vector<8x64xf32>
    %c40_96 = arith.constant 40 : index
    %c0_97 = arith.constant 0 : index
    %323 = vector.load %arg8[%c40_96, %c0_97] : memref<64x256xf32, #tpu.memory_space<vmem>>, vector<8x256xf32>
    %c16_98 = arith.constant 16 : index
    %c0_99 = arith.constant 0 : index
    %324 = vector.load %arg8[%c16_98, %c0_99] : memref<64x256xf32, #tpu.memory_space<vmem>>, vector<8x256xf32>
    %325 = arith.select %18, %323, %324 : vector<8x256xi1>, vector<8x256xf32>
    %cst_100 = arith.constant dense<0.000000e+00> : vector<8x256xf32>
    %326 = tpu.matmul %322, %220, %cst_100 {dimension_numbers = #tpu.dot_dimension_numbers<[1], [0], [0], [1], [0, 0, 1, 1], [], []>} : vector<8x64xf32>, vector<64x256xf32>, vector<8x256xf32> -> vector<8x256xf32>
    %327 = arith.addf %325, %326 : vector<8x256xf32>
    %328 = arith.negf %327 : vector<8x256xf32>
    %329 = math.exp %328 : vector<8x256xf32>
    %cst_101 = arith.constant 1.000000e+00 : f32
    %330 = vector.broadcast %cst_101 : f32 to vector<8x256xf32>
    %331 = arith.addf %330, %329 : vector<8x256xf32>
    %332 = arith.divf %330, %331 : vector<8x256xf32>
    %333 = vector.extract_strided_slice %327 {offsets = [0, 192], sizes = [8, 64], strides = [1, 1]} : vector<8x256xf32> to vector<8x64xf32>
    %334 = math.tanh %333 : vector<8x64xf32>
    %335 = vector.extract_strided_slice %332 {offsets = [0, 0], sizes = [8, 64], strides = [1, 1]} : vector<8x256xf32> to vector<8x64xf32>
    %336 = vector.extract_strided_slice %332 {offsets = [0, 64], sizes = [8, 64], strides = [1, 1]} : vector<8x256xf32> to vector<8x64xf32>
    %337 = vector.extract_strided_slice %332 {offsets = [0, 128], sizes = [8, 64], strides = [1, 1]} : vector<8x256xf32> to vector<8x64xf32>
    %338 = arith.mulf %336, %320 : vector<8x64xf32>
    %339 = arith.mulf %335, %334 : vector<8x64xf32>
    %340 = arith.addf %338, %339 : vector<8x64xf32>
    %341 = math.tanh %340 : vector<8x64xf32>
    %342 = arith.mulf %337, %341 : vector<8x64xf32>
    %c48_102 = arith.constant 48 : index
    %c0_103 = arith.constant 0 : index
    %343 = vector.load %arg8[%c48_102, %c0_103] : memref<64x256xf32, #tpu.memory_space<vmem>>, vector<8x256xf32>
    %c8_104 = arith.constant 8 : index
    %c0_105 = arith.constant 0 : index
    %344 = vector.load %arg8[%c8_104, %c0_105] : memref<64x256xf32, #tpu.memory_space<vmem>>, vector<8x256xf32>
    %345 = arith.select %18, %343, %344 : vector<8x256xi1>, vector<8x256xf32>
    %cst_106 = arith.constant dense<0.000000e+00> : vector<8x256xf32>
    %346 = tpu.matmul %342, %220, %cst_106 {dimension_numbers = #tpu.dot_dimension_numbers<[1], [0], [0], [1], [0, 0, 1, 1], [], []>} : vector<8x64xf32>, vector<64x256xf32>, vector<8x256xf32> -> vector<8x256xf32>
    %347 = arith.addf %345, %346 : vector<8x256xf32>
    %348 = arith.negf %347 : vector<8x256xf32>
    %349 = math.exp %348 : vector<8x256xf32>
    %cst_107 = arith.constant 1.000000e+00 : f32
    %350 = vector.broadcast %cst_107 : f32 to vector<8x256xf32>
    %351 = arith.addf %350, %349 : vector<8x256xf32>
    %352 = arith.divf %350, %351 : vector<8x256xf32>
    %353 = vector.extract_strided_slice %347 {offsets = [0, 192], sizes = [8, 64], strides = [1, 1]} : vector<8x256xf32> to vector<8x64xf32>
    %354 = math.tanh %353 : vector<8x64xf32>
    %355 = vector.extract_strided_slice %352 {offsets = [0, 0], sizes = [8, 64], strides = [1, 1]} : vector<8x256xf32> to vector<8x64xf32>
    %356 = vector.extract_strided_slice %352 {offsets = [0, 64], sizes = [8, 64], strides = [1, 1]} : vector<8x256xf32> to vector<8x64xf32>
    %357 = vector.extract_strided_slice %352 {offsets = [0, 128], sizes = [8, 64], strides = [1, 1]} : vector<8x256xf32> to vector<8x64xf32>
    %358 = arith.mulf %356, %340 : vector<8x64xf32>
    %359 = arith.mulf %355, %354 : vector<8x64xf32>
    %360 = arith.addf %358, %359 : vector<8x64xf32>
    %361 = math.tanh %360 : vector<8x64xf32>
    %362 = arith.mulf %357, %361 : vector<8x64xf32>
    %c56_108 = arith.constant 56 : index
    %c0_109 = arith.constant 0 : index
    %363 = vector.load %arg8[%c56_108, %c0_109] : memref<64x256xf32, #tpu.memory_space<vmem>>, vector<8x256xf32>
    %c0_110 = arith.constant 0 : index
    %c0_111 = arith.constant 0 : index
    %364 = vector.load %arg8[%c0_110, %c0_111] : memref<64x256xf32, #tpu.memory_space<vmem>>, vector<8x256xf32>
    %365 = arith.select %18, %363, %364 : vector<8x256xi1>, vector<8x256xf32>
    %cst_112 = arith.constant dense<0.000000e+00> : vector<8x256xf32>
    %366 = tpu.matmul %362, %220, %cst_112 {dimension_numbers = #tpu.dot_dimension_numbers<[1], [0], [0], [1], [0, 0, 1, 1], [], []>} : vector<8x64xf32>, vector<64x256xf32>, vector<8x256xf32> -> vector<8x256xf32>
    %367 = arith.addf %365, %366 : vector<8x256xf32>
    %368 = arith.negf %367 : vector<8x256xf32>
    %369 = math.exp %368 : vector<8x256xf32>
    %cst_113 = arith.constant 1.000000e+00 : f32
    %370 = vector.broadcast %cst_113 : f32 to vector<8x256xf32>
    %371 = arith.addf %370, %369 : vector<8x256xf32>
    %372 = arith.divf %370, %371 : vector<8x256xf32>
    %373 = vector.extract_strided_slice %367 {offsets = [0, 192], sizes = [8, 64], strides = [1, 1]} : vector<8x256xf32> to vector<8x64xf32>
    %374 = math.tanh %373 : vector<8x64xf32>
    %375 = vector.extract_strided_slice %372 {offsets = [0, 0], sizes = [8, 64], strides = [1, 1]} : vector<8x256xf32> to vector<8x64xf32>
    %376 = vector.extract_strided_slice %372 {offsets = [0, 64], sizes = [8, 64], strides = [1, 1]} : vector<8x256xf32> to vector<8x64xf32>
    %377 = vector.extract_strided_slice %372 {offsets = [0, 128], sizes = [8, 64], strides = [1, 1]} : vector<8x256xf32> to vector<8x64xf32>
    %378 = arith.mulf %376, %360 : vector<8x64xf32>
    %379 = arith.mulf %375, %374 : vector<8x64xf32>
    %380 = arith.addf %378, %379 : vector<8x64xf32>
    %381 = math.tanh %380 : vector<8x64xf32>
    %382 = arith.mulf %377, %381 : vector<8x64xf32>
    %383 = vector.extract_strided_slice %242 {offsets = [0, 0], sizes = [8, 32], strides = [1, 1]} : vector<8x64xf32> to vector<8x32xf32>
    %384 = vector.extract_strided_slice %382 {offsets = [0, 32], sizes = [8, 32], strides = [1, 1]} : vector<8x64xf32> to vector<8x32xf32>
    %385 = tpu.concatenate %383, %384 in 1 : vector<8x32xf32>, vector<8x32xf32> -> vector<8x64xf32>
    %386 = vector.extract_strided_slice %262 {offsets = [0, 0], sizes = [8, 32], strides = [1, 1]} : vector<8x64xf32> to vector<8x32xf32>
    %387 = vector.extract_strided_slice %362 {offsets = [0, 32], sizes = [8, 32], strides = [1, 1]} : vector<8x64xf32> to vector<8x32xf32>
    %388 = tpu.concatenate %386, %387 in 1 : vector<8x32xf32>, vector<8x32xf32> -> vector<8x64xf32>
    %389 = vector.extract_strided_slice %282 {offsets = [0, 0], sizes = [8, 32], strides = [1, 1]} : vector<8x64xf32> to vector<8x32xf32>
    %390 = vector.extract_strided_slice %342 {offsets = [0, 32], sizes = [8, 32], strides = [1, 1]} : vector<8x64xf32> to vector<8x32xf32>
    %391 = tpu.concatenate %389, %390 in 1 : vector<8x32xf32>, vector<8x32xf32> -> vector<8x64xf32>
    %392 = vector.extract_strided_slice %302 {offsets = [0, 0], sizes = [8, 32], strides = [1, 1]} : vector<8x64xf32> to vector<8x32xf32>
    %393 = vector.extract_strided_slice %322 {offsets = [0, 32], sizes = [8, 32], strides = [1, 1]} : vector<8x64xf32> to vector<8x32xf32>
    %394 = tpu.concatenate %392, %393 in 1 : vector<8x32xf32>, vector<8x32xf32> -> vector<8x64xf32>
    %395 = vector.extract_strided_slice %322 {offsets = [0, 0], sizes = [8, 32], strides = [1, 1]} : vector<8x64xf32> to vector<8x32xf32>
    %396 = vector.extract_strided_slice %302 {offsets = [0, 32], sizes = [8, 32], strides = [1, 1]} : vector<8x64xf32> to vector<8x32xf32>
    %397 = tpu.concatenate %395, %396 in 1 : vector<8x32xf32>, vector<8x32xf32> -> vector<8x64xf32>
    %398 = vector.extract_strided_slice %342 {offsets = [0, 0], sizes = [8, 32], strides = [1, 1]} : vector<8x64xf32> to vector<8x32xf32>
    %399 = vector.extract_strided_slice %282 {offsets = [0, 32], sizes = [8, 32], strides = [1, 1]} : vector<8x64xf32> to vector<8x32xf32>
    %400 = tpu.concatenate %398, %399 in 1 : vector<8x32xf32>, vector<8x32xf32> -> vector<8x64xf32>
    %401 = vector.extract_strided_slice %362 {offsets = [0, 0], sizes = [8, 32], strides = [1, 1]} : vector<8x64xf32> to vector<8x32xf32>
    %402 = vector.extract_strided_slice %262 {offsets = [0, 32], sizes = [8, 32], strides = [1, 1]} : vector<8x64xf32> to vector<8x32xf32>
    %403 = tpu.concatenate %401, %402 in 1 : vector<8x32xf32>, vector<8x32xf32> -> vector<8x64xf32>
    %404 = vector.extract_strided_slice %382 {offsets = [0, 0], sizes = [8, 32], strides = [1, 1]} : vector<8x64xf32> to vector<8x32xf32>
    %405 = vector.extract_strided_slice %242 {offsets = [0, 32], sizes = [8, 32], strides = [1, 1]} : vector<8x64xf32> to vector<8x32xf32>
    %406 = tpu.concatenate %404, %405 in 1 : vector<8x32xf32>, vector<8x32xf32> -> vector<8x64xf32>
    %407 = tpu.concatenate %385, %388, %391, %394, %397, %400, %403, %406 in 0 : vector<8x64xf32>, vector<8x64xf32>, vector<8x64xf32>, vector<8x64xf32>, vector<8x64xf32>, vector<8x64xf32>, vector<8x64xf32>, vector<8x64xf32> -> vector<64x64xf32>
    %c0_114 = arith.constant 0 : index
    %c0_115 = arith.constant 0 : index
    %408 = vector.load %arg7[%c0_114, %c0_115] : memref<64x64xf32, #tpu.memory_space<vmem>>, vector<64x64xf32>
    tpu.vector_store %arg7[%c0_114, %c0_115], %407 {strides = array<i32>} : memref<64x64xf32, #tpu.memory_space<vmem>>, vector<64x64xf32>,
    return
  }
}

</mosaic_0001>

<llo_original>
// kernel: lstm_feature_extractor.1
$region0: #{lstm_feature_extractor.1}
  #allocation0 [shape = 'u32[]', space=smem, size = 0x4, offset = 0x4, fixed_abs, tag = 'smem constant byte address 0x4 - core index']
  #allocation1 [shape = 'u32[144,128]{1,0:T(1,128)}', space=vmem, size = 0x12000, scoped, tag = 'internal scratch']
  #allocation2 [shape = 'f32[64,256]{1,0:T(8,128)}', space=vmem, size = 0x10000, scoped, tag = 'scratch operand']
  %s0 = inlined_call_operand.vmem [shape: f32[64,16], index: 0, kind: input, shape index: {}]
  %s1 = inlined_call_operand.vmem [shape: f32[16,256], index: 1, kind: input, shape index: {}]
  %s2 = inlined_call_operand.hbm [shape: f32[64,256], index: 2, kind: input, shape index: {}]
  %s3 = inlined_call_operand.vmem [shape: f32[1,256], index: 3, kind: input, shape index: {}]
  %s4 = inlined_call_operand.hbm [shape: f32[64,256], index: 4, kind: input, shape index: {}]
  %s5 = inlined_call_operand.hbm [shape: f32[64,256], index: 5, kind: input, shape index: {}]
  %s6 = inlined_call_operand.vmem [shape: f32[1,256], index: 6, kind: input, shape index: {}]
  %s7 = inlined_call_operand.vmem [shape: f32[64,64], index: 7, kind: output, shape index: {}]
  %s8 = sld [smem:[#allocation0]]
  $region50: #{lstm_feature_extractor.1} parent=0
    _
  %s10 = ssub.s32 1, %s8
  %s11 = scalar_select 0, %s10, %s8
  $region1: #{lstm_feature_extractor.1} parent=0
    #allocation3 [shape = 'u8[65536]{0}', space=vmem, size = 0x10000, scoped, tag = 'input window, operand 2, single buffered']
    #allocation4 [shape = 's32[1]{0}', space=sflag, size = 0x4, scoped, tag = 'scoped memory for lstm_feature_extractor.1']
    #allocation5 [shape = 'u8[65536]{0}', space=vmem, size = 0x10000, scoped, tag = 'input window, operand 4, single buffered']
    #allocation6 [shape = 's32[1]{0}', space=sflag, size = 0x4, scoped, tag = 'scoped memory for lstm_feature_extractor.1']
    #allocation7 [shape = 'u8[65536]{0}', space=vmem, size = 0x10000, scoped, tag = 'input window, operand 5, single buffered']
    %12 = vsyncpa [#allocation4], 0
    %13 = vsyncpa [#allocation6], 0
    // Predicated region
    $region2: #{lstm_feature_extractor.1} parent=1 // pred_check
      _
    $region3: #{lstm_feature_extractor.1} parent=1 // pred_check_branch
      %15 = sbr.rel (0) target = $region5
    $region4: #{lstm_feature_extractor.1} parent=1 // pred_region
      _
    $region5: #{lstm_feature_extractor.1} parent=1 // pred_fallthru
      _
    // Predicated region
    $region6: #{lstm_feature_extractor.1} parent=1 // pred_check
      _
    $region7: #{lstm_feature_extractor.1} parent=1 // pred_check_branch
      %17 = sbr.rel (0) target = $region9
    $region8: #{lstm_feature_extractor.1} parent=1 // pred_region
      _
    $region9: #{lstm_feature_extractor.1} parent=1 // pred_fallthru
      _
    // Predicated region
    $region10: #{lstm_feature_extractor.1} parent=1 // pred_check
      _
    $region11: #{lstm_feature_extractor.1} parent=1 // pred_check_branch
      %19 = sbr.rel (0) target = $region13
    $region12: #{lstm_feature_extractor.1} parent=1 // pred_region
      %s21 = ssub.s32 2048, 2048
      %22 = vsyncadd [#allocation4], %s21
      %s23 = sshll.u32 [#allocation3], 4
      %s24 = int_to_ptr.vmem [resolvable:$true] %s23
      %29 = dma.hbm_to_vmem [thread:$0]  %s2, 2048, %s24, [#allocation4], 256, 256, 16
    $region13: #{lstm_feature_extractor.1} parent=1 // pred_fallthru
      _
    // Predicated region
    $region14: #{lstm_feature_extractor.1} parent=1 // pred_check
      _
    $region15: #{lstm_feature_extractor.1} parent=1 // pred_check_branch
      %31 = sbr.rel (0) target = $region17
    $region16: #{lstm_feature_extractor.1} parent=1 // pred_region
      _
    $region17: #{lstm_feature_extractor.1} parent=1 // pred_fallthru
      _
    // Predicated region
    $region18: #{lstm_feature_extractor.1} parent=1 // pred_check
      _
    $region19: #{lstm_feature_extractor.1} parent=1 // pred_check_branch
      %33 = sbr.rel (0) target = $region21
    $region20: #{lstm_feature_extractor.1} parent=1 // pred_region
      %s35 = ssub.s32 2048, 2048
      %36 = vsyncadd [#allocation6], %s35
      %s37 = sshll.u32 [#allocation5], 4
      %s38 = int_to_ptr.vmem [resolvable:$true] %s37
      %43 = dma.hbm_to_vmem [thread:$0]  %s4, 2048, %s38, [#allocation6], 256, 256, 16
    $region21: #{lstm_feature_extractor.1} parent=1 // pred_fallthru
      _
    // Predicated region
    $region22: #{lstm_feature_extractor.1} parent=1 // pred_check
      _
    $region23: #{lstm_feature_extractor.1} parent=1 // pred_check_branch
      %45 = sbr.rel (0) target = $region25
    $region24: #{lstm_feature_extractor.1} parent=1 // pred_region
      %s47 = ssub.s32 2048, 2048
      %48 = vsyncadd [#allocation6], %s47
      %s49 = sshll.u32 [#allocation7], 4
      %s50 = int_to_ptr.vmem [resolvable:$true] %s49
      %55 = dma.hbm_to_vmem [thread:$0]  %s5, 2048, %s50, [#allocation6], 256, 256, 16
    $region25: #{lstm_feature_extractor.1} parent=1 // pred_fallthru
      _
    // Predicated region
    $region26: #{lstm_feature_extractor.1} parent=1 // pred_check
      _
    $region27: #{lstm_feature_extractor.1} parent=1 // pred_check_branch
      %57 = sbr.rel (0) target = $region29
    $region28: #{lstm_feature_extractor.1} parent=1 // pred_region
      _
    $region29: #{lstm_feature_extractor.1} parent=1 // pred_fallthru
      _
    // Predicated region
    $region30: #{lstm_feature_extractor.1} parent=1 // pred_check
      _
    $region31: #{lstm_feature_extractor.1} parent=1 // pred_check_branch
      %59 = sbr.rel (0) target = $region33
    $region32: #{lstm_feature_extractor.1} parent=1 // pred_region
      %60 = dma.done [#allocation4], 2048
    $region33: #{lstm_feature_extractor.1} parent=1 // pred_fallthru
      _
    // Predicated region
    $region34: #{lstm_feature_extractor.1} parent=1 // pred_check
      _
    $region35: #{lstm_feature_extractor.1} parent=1 // pred_check_branch
      %62 = sbr.rel (0) target = $region37
    $region36: #{lstm_feature_extractor.1} parent=1 // pred_region
      %63 = dma.done [#allocation6], 2048
    $region37: #{lstm_feature_extractor.1} parent=1 // pred_fallthru
      _
    // Predicated region
    $region38: #{lstm_feature_extractor.1} parent=1 // pred_check
      _
    $region39: #{lstm_feature_extractor.1} parent=1 // pred_check_branch
      %65 = sbr.rel (0) target = $region41
    $region40: #{lstm_feature_extractor.1} parent=1 // pred_region
      %66 = dma.done [#allocation6], 2048
    $region41: #{lstm_feature_extractor.1} parent=1 // pred_fallthru
      _
    %v67 = vlaneseq
    %v68 = vand.u32 %v67, 127
    %v69 = vadd.s32 %v68, 128
    %vm70 = vcmp.lt.s32.totalorder %v68, 0
    %v71 = vsub.s32 0, %v68
    %v72 = vsel %vm70, %v71, %v68
    %v73 = vshrl.u32 %v72, 6
    %v74 = vand.u32 %v72, 63
    %v75 = vsub.s32 0, %v74
    %v76 = vsel %vm70, %v75, %v74
    %vm77 = vcmp.lt.s32.totalorder %v69, 0
    %v78 = vsub.s32 0, %v69
    %v79 = vsel %vm77, %v78, %v69
    %v80 = vshrl.u32 %v79, 6
    %v81 = vand.u32 %v79, 63
    %v82 = vsub.s32 0, %v81
    %v83 = vsel %vm77, %v82, %v81
    %vm84 = vcmp.ne.s32.totalorder %v76, 0
    %vm85 = vcmp.ne.s32.totalorder %v83, 0
    %vm86 = vcmp.lt.s32.totalorder %v76, 0
    %vm87 = vcmp.lt.s32.totalorder %v83, 0
    %vm88 = vmand %vm86, %vm84
    %vm89 = vmand %vm87, %vm85
    %v90 = vadd.s32 %v76, 64
    %v91 = vadd.s32 %v83, 64
    %v92 = vsel %vm88, %v90, %v76
    %v93 = vsel %vm89, %v91, %v83
    %vm94 = vcmp.lt.s32.totalorder %v92, 32
    %vm95 = vcmp.lt.s32.totalorder %v93, 32
    %v96 = vld [vmem:[%s0] sm:$0xff]
    %v97 = vld [vmem:[%s0 + $0x8] sm:$0xff]
    %v98 = vld [vmem:[%s0 + $0x10] sm:$0xff]
    %v99 = vld [vmem:[%s0 + $0x18] sm:$0xff]
    %v100 = vld [vmem:[%s0 + $0x20] sm:$0xff]
    %v101 = vld [vmem:[%s0 + $0x28] sm:$0xff]
    %v102 = vld [vmem:[%s0 + $0x30] sm:$0xff]
    %v103 = vld [vmem:[%s0 + $0x38] sm:$0xff]
    %v104 = vld [vmem:[%s1] sm:$0xff]
    %v105 = vld [vmem:[%s1 + $0x8] sm:$0xff]
    %v106 = vld [vmem:[%s1 + $0x10] sm:$0xff]
    %v107 = vld [vmem:[%s1 + $0x18] sm:$0xff]
    %v108 = vld [vmem:[%s3] sm:$0x3]
    %v110 = vlaneseq
    %v111 = vshrl.u32 %v110, 7
    %v112 = vsub.s32 0, %v111
    %v113 = vrot.slane %v108, %v112
    %v114 = vlaneseq
    %v115 = vshrl.u32 %v114, 7
    %v116 = vsub.s32 1, %v115
    %v117 = vrot.slane %v108, %v116
    %vm120 = vcmask 130048
    %v122 = vsel %vm120, %v96, 0
    %v125 = vsel %vm120, %v97, 0
    %v128 = vsel %vm120, %v98, 0
    %v131 = vsel %vm120, %v99, 0
    %v134 = vsel %vm120, %v100, 0
    %v137 = vsel %vm120, %v101, 0
    %v140 = vsel %vm120, %v102, 0
    %v143 = vsel %vm120, %v103, 0
    %145 = vmatprep.subr.mxu0 %v105
    %146 = vmatpush1.msra.mxu0 %v104
    %147 = vmatprep.subr.mxu0 %v107
    %148 = vmatpush1.msra.mxu0 %v106
    %149 = vmatprep.subr.mxu0 0.0
    %150 = vmatpush1.msra.mxu0 0.0
    %151 = vmatprep.subr.mxu0 0.0
    %152 = vmatpush1.msra.mxu0 0.0
    %153 = vmatprep.subr.mxu0 0.0
    %154 = vmatpush1.msra.mxu0 0.0
    %155 = vmatprep.subr.mxu0 0.0
    %156 = vmatpush1.msra.mxu0 0.0
    %157 = vmatprep.subr.mxu0 0.0
    %158 = vmatpush1.msra.mxu0 0.0
    %159 = vmatprep.subr.mxu0 0.0
    %160 = vmatpush1.msra.mxu0 0.0
    %161 = vmatprep.subr.mxu0 0.0
    %162 = vmatpush1.msra.mxu0 0.0
    %163 = vmatprep.subr.mxu0 0.0
    %164 = vmatpush1.msra.mxu0 0.0
    %165 = vmatprep.subr.mxu0 0.0
    %166 = vmatpush1.msra.mxu0 0.0
    %167 = vmatprep.subr.mxu0 0.0
    %168 = vmatpush1.msra.mxu0 0.0
    %169 = vmatprep.subr.mxu0 0.0
    %170 = vmatpush1.msra.mxu0 0.0
    %171 = vmatprep.subr.mxu0 0.0
    %172 = vmatpush1.msra.mxu0 0.0
    %173 = vmatprep.subr.mxu0 0.0
    %174 = vmatpush1.msra.mxu0 0.0
    %175 = vmatprep.subr.mxu0 0.0
    %176 = vmatpush1.msra.mxu0 0.0
    %177 = vmatprep.subr.mxu0 0.0
    %178 = vmatpush1.msra.mxu0 0.0
    %179 = vmatprep.subr.mxu0 0.0
    %180 = vmatpush1.msra.mxu0 0.0
    %181 = vmatprep.subr.mxu0 0.0
    %182 = vmatpush1.msra.mxu0 0.0
    %183 = vmatprep.subr.mxu0 0.0
    %184 = vmatpush1.msra.mxu0 0.0
    %185 = vmatprep.subr.mxu0 0.0
    %186 = vmatpush1.msra.mxu0 0.0
    %187 = vmatprep.subr.mxu0 0.0
    %188 = vmatpush1.msra.mxu0 0.0
    %189 = vmatprep.subr.mxu0 0.0
    %190 = vmatpush1.msra.mxu0 0.0
    %191 = vmatprep.subr.mxu0 0.0
    %192 = vmatpush1.msra.mxu0 0.0
    %193 = vmatprep.subr.mxu0 0.0
    %194 = vmatpush1.msra.mxu0 0.0
    %195 = vmatprep.subr.mxu0 0.0
    %196 = vmatpush1.msra.mxu0 0.0
    %197 = vmatprep.subr.mxu0 0.0
    %198 = vmatpush1.msra.mxu0 0.0
    %199 = vmatprep.subr.mxu0 0.0
    %200 = vmatpush1.msra.mxu0 0.0
    %201 = vmatprep.subr.mxu0 0.0
    %202 = vmatpush1.msra.mxu0 0.0
    %203 = vmatprep.subr.mxu0 0.0
    %204 = vmatpush1.msra.mxu0 0.0
    %205 = vmatprep.subr.mxu0 0.0
    %206 = vmatpush1.msra.mxu0 0.0
    %207 = vmatprep.subr.mxu0 0.0
    %208 = vmatpush1.msra.mxu0 0.0
    %209 = vmatprep.mubr.f32.mxu0 0.0
    %210 = vmatmul.mubr.f32.gmra.mrb[0].mxu0 %v122
    %v211 = vpop.f32.mrb[0].mxu0
    %v212 = vadd.f32 %v113, %v211
    %v213 = vpop.f32.mrb[0].mxu0
    %v214 = vadd.f32 %v117, %v213
    %215 = vmatprep.mubr.f32.mxu0 0.0
    %216 = vmatmul.mubr.f32.gmra.mrb[0].mxu0 %v125
    %v217 = vpop.f32.mrb[0].mxu0
    %v218 = vadd.f32 %v113, %v217
    %v219 = vpop.f32.mrb[0].mxu0
    %v220 = vadd.f32 %v117, %v219
    %221 = vmatprep.mubr.f32.mxu0 0.0
    %222 = vmatmul.mubr.f32.gmra.mrb[0].mxu0 %v128
    %v223 = vpop.f32.mrb[0].mxu0
    %v224 = vadd.f32 %v113, %v223
    %v225 = vpop.f32.mrb[0].mxu0
    %v226 = vadd.f32 %v117, %v225
    %227 = vmatprep.mubr.f32.mxu0 0.0
    %228 = vmatmul.mubr.f32.gmra.mrb[0].mxu0 %v131
    %v229 = vpop.f32.mrb[0].mxu0
    %v230 = vadd.f32 %v113, %v229
    %v231 = vpop.f32.mrb[0].mxu0
    %v232 = vadd.f32 %v117, %v231
    %233 = vmatprep.mubr.f32.mxu0 0.0
    %234 = vmatmul.mubr.f32.gmra.mrb[0].mxu0 %v134
    %v235 = vpop.f32.mrb[0].mxu0
    %v236 = vadd.f32 %v113, %v235
    %v237 = vpop.f32.mrb[0].mxu0
    %v238 = vadd.f32 %v117, %v237
    %239 = vmatprep.mubr.f32.mxu0 0.0
    %240 = vmatmul.mubr.f32.gmra.mrb[0].mxu0 %v137
    %v241 = vpop.f32.mrb[0].mxu0
    %v242 = vadd.f32 %v113, %v241
    %v243 = vpop.f32.mrb[0].mxu0
    %v244 = vadd.f32 %v117, %v243
    %245 = vmatprep.mubr.f32.mxu0 0.0
    %246 = vmatmul.mubr.f32.gmra.mrb[0].mxu0 %v140
    %v247 = vpop.f32.mrb[0].mxu0
    %v248 = vadd.f32 %v113, %v247
    %v249 = vpop.f32.mrb[0].mxu0
    %v250 = vadd.f32 %v117, %v249
    %251 = vmatprep.mubr.f32.mxu0 0.0
    %252 = vmatmul.mubr.f32.gmra.mrb[0].mxu0 %v143
    %v253 = vpop.f32.mrb[0].mxu0
    %v254 = vadd.f32 %v113, %v253
    %v255 = vpop.f32.mrb[0].mxu0
    %v256 = vadd.f32 %v117, %v255
    %257 = vdwg.mxu0
    %258 = vst [vmem:[#allocation2] sm:$0xff] %v212
    %259 = vst [vmem:[#allocation2 + $0x8] sm:$0xff] %v214
    %260 = vst [vmem:[#allocation2 + $0x10] sm:$0xff] %v218
    %261 = vst [vmem:[#allocation2 + $0x18] sm:$0xff] %v220
    %262 = vst [vmem:[#allocation2 + $0x20] sm:$0xff] %v224
    %263 = vst [vmem:[#allocation2 + $0x28] sm:$0xff] %v226
    %264 = vst [vmem:[#allocation2 + $0x30] sm:$0xff] %v230
    %265 = vst [vmem:[#allocation2 + $0x38] sm:$0xff] %v232
    %266 = vst [vmem:[#allocation2 + $0x40] sm:$0xff] %v236
    %267 = vst [vmem:[#allocation2 + $0x48] sm:$0xff] %v238
    %268 = vst [vmem:[#allocation2 + $0x50] sm:$0xff] %v242
    %269 = vst [vmem:[#allocation2 + $0x58] sm:$0xff] %v244
    %270 = vst [vmem:[#allocation2 + $0x60] sm:$0xff] %v248
    %271 = vst [vmem:[#allocation2 + $0x68] sm:$0xff] %v250
    %272 = vst [vmem:[#allocation2 + $0x70] sm:$0xff] %v254
    %273 = vst [vmem:[#allocation2 + $0x78] sm:$0xff] %v256
    %v274 = vld [vmem:[#allocation3] sm:$0xff]
    %v275 = vld [vmem:[#allocation3 + $0x8] sm:$0xff]
    %v276 = vld [vmem:[#allocation3 + $0x10] sm:$0xff]
    %v277 = vld [vmem:[#allocation3 + $0x18] sm:$0xff]
    %v278 = vld [vmem:[#allocation3 + $0x20] sm:$0xff]
    %v279 = vld [vmem:[#allocation3 + $0x28] sm:$0xff]
    %v280 = vld [vmem:[#allocation3 + $0x30] sm:$0xff]
    %v281 = vld [vmem:[#allocation3 + $0x38] sm:$0xff]
    %v282 = vld [vmem:[#allocation3 + $0x40] sm:$0xff]
    %v283 = vld [vmem:[#allocation3 + $0x48] sm:$0xff]
    %v284 = vld [vmem:[#allocation3 + $0x50] sm:$0xff]
    %v285 = vld [vmem:[#allocation3 + $0x58] sm:$0xff]
    %v286 = vld [vmem:[#allocation3 + $0x60] sm:$0xff]
    %v287 = vld [vmem:[#allocation3 + $0x68] sm:$0xff]
    %v288 = vld [vmem:[#allocation3 + $0x70] sm:$0xff]
    %v289 = vld [vmem:[#allocation3 + $0x78] sm:$0xff]
    %v290 = vld [vmem:[#allocation2] sm:$0xff]
    %v291 = vld [vmem:[#allocation2 + $0x8] sm:$0xff]
    %v292 = vld [vmem:[#allocation2 + $0x70] sm:$0xff]
    %v293 = vld [vmem:[#allocation2 + $0x78] sm:$0xff]
    %v294 = vsel %vm94, %v290, %v292
    %v295 = vsel %vm95, %v291, %v293
    %vm296 = vcmask 523264
    %v298 = vsel %vm296, 0.0, 0
    %300 = vmatprep.subr.mxu0 %v275
    %301 = vmatpush1.msra.mxu0 %v274
    %302 = vmatprep.subr.mxu0 %v277
    %303 = vmatpush1.msra.mxu0 %v276
    %304 = vmatprep.subr.mxu0 %v279
    %305 = vmatpush1.msra.mxu0 %v278
    %306 = vmatprep.subr.mxu0 %v281
    %307 = vmatpush1.msra.mxu0 %v280
    %308 = vmatprep.subr.mxu0 %v283
    %309 = vmatpush1.msra.mxu0 %v282
    %310 = vmatprep.subr.mxu0 %v285
    %311 = vmatpush1.msra.mxu0 %v284
    %312 = vmatprep.subr.mxu0 %v287
    %313 = vmatpush1.msra.mxu0 %v286
    %314 = vmatprep.subr.mxu0 %v289
    %315 = vmatpush1.msra.mxu0 %v288
    %316 = vmatprep.subr.mxu0 0.0
    %317 = vmatpush1.msra.mxu0 0.0
    %318 = vmatprep.subr.mxu0 0.0
    %319 = vmatpush1.msra.mxu0 0.0
    %320 = vmatprep.subr.mxu0 0.0
    %321 = vmatpush1.msra.mxu0 0.0
    %322 = vmatprep.subr.mxu0 0.0
    %323 = vmatpush1.msra.mxu0 0.0
    %324 = vmatprep.subr.mxu0 0.0
    %325 = vmatpush1.msra.mxu0 0.0
    %326 = vmatprep.subr.mxu0 0.0
    %327 = vmatpush1.msra.mxu0 0.0
    %328 = vmatprep.subr.mxu0 0.0
    %329 = vmatpush1.msra.mxu0 0.0
    %330 = vmatprep.subr.mxu0 0.0
    %331 = vmatpush1.msra.mxu0 0.0
    %332 = vmatprep.subr.mxu0 0.0
    %333 = vmatpush1.msra.mxu0 0.0
    %334 = vmatprep.subr.mxu0 0.0
    %335 = vmatpush1.msra.mxu0 0.0
    %336 = vmatprep.subr.mxu0 0.0
    %337 = vmatpush1.msra.mxu0 0.0
    %338 = vmatprep.subr.mxu0 0.0
    %339 = vmatpush1.msra.mxu0 0.0
    %340 = vmatprep.subr.mxu0 0.0
    %341 = vmatpush1.msra.mxu0 0.0
    %342 = vmatprep.subr.mxu0 0.0
    %343 = vmatpush1.msra.mxu0 0.0
    %344 = vmatprep.subr.mxu0 0.0
    %345 = vmatpush1.msra.mxu0 0.0
    %346 = vmatprep.subr.mxu0 0.0
    %347 = vmatpush1.msra.mxu0 0.0
    %348 = vmatprep.subr.mxu0 0.0
    %349 = vmatpush1.msra.mxu0 0.0
    %350 = vmatprep.subr.mxu0 0.0
    %351 = vmatpush1.msra.mxu0 0.0
    %352 = vmatprep.subr.mxu0 0.0
    %353 = vmatpush1.msra.mxu0 0.0
    %354 = vmatprep.subr.mxu0 0.0
    %355 = vmatpush1.msra.mxu0 0.0
    %356 = vmatprep.subr.mxu0 0.0
    %357 = vmatpush1.msra.mxu0 0.0
    %358 = vmatprep.subr.mxu0 0.0
    %359 = vmatpush1.msra.mxu0 0.0
    %360 = vmatprep.subr.mxu0 0.0
    %361 = vmatpush1.msra.mxu0 0.0
    %362 = vmatprep.subr.mxu0 0.0
    %363 = vmatpush1.msra.mxu0 0.0
    %364 = vmatprep.mubr.f32.mxu0 0.0
    %365 = vmatmul.mubr.f32.gmra.mrb[0].mxu0 %v298
    %v366 = vpop.f32.mrb[0].mxu0
    %v367 = vadd.f32 0.0, %v366
    %v368 = vpop.f32.mrb[0].mxu0
    %v369 = vadd.f32 0.0, %v368
    %370 = vdwg.mxu0
    %v371 = vadd.f32 %v294, %v367
    %v372 = vadd.f32 %v295, %v369
    %v373 = vxor.u32 %v371, 2147483648
    %v374 = vxor.u32 %v372, 2147483648
    %v375 = vmul.f32 %v373, 1.442695
    %v376 = vpow.pop %v375
    %v377 = vmul.f32 %v374, 1.442695
    %v378 = vpow.pop %v377
    %v379 = vadd.f32 %v376, 1.0
    %v380 = vadd.f32 %v378, 1.0
    %v381 = vrcp.pop %v379
    %v382 = vmul.f32 1.0, %v381
    %v383 = vrcp.pop %v380
    %v384 = vmul.f32 1.0, %v383
    %v385 = vtanh.pop %v372
    %v386 = vmul.f32 %v382, 0.0
    %388 = vrot.lane.b32.xlu0 %v385, 64
    %v389 = vpop.permute.xlu0 %388
    %v391 = vmul.f32 %v382, %v389
    %393 = vrot.lane.b32.xlu0 %v391, 64
    %v394 = vpop.permute.xlu0 %393
    %v396 = vadd.f32 %v386, %v394
    %v397 = vtanh.pop %v396
    %399 = vrot.lane.b32.xlu0 %v397, 64
    %v400 = vpop.permute.xlu0 %399
    %v402 = vmul.f32 %v384, %v400
    %v403 = vld [vmem:[#allocation2 + $0x10] sm:$0xff]
    %v404 = vld [vmem:[#allocation2 + $0x18] sm:$0xff]
    %v405 = vld [vmem:[#allocation2 + $0x60] sm:$0xff]
    %v406 = vld [vmem:[#allocation2 + $0x68] sm:$0xff]
    %v407 = vsel %vm94, %v403, %v405
    %v408 = vsel %vm95, %v404, %v406
    %v410 = vsel %vm296, %v402, 0
    %412 = vmatprep.subr.mxu0 %v275
    %413 = vmatpush1.msra.mxu0 %v274
    %414 = vmatprep.subr.mxu0 %v277
    %415 = vmatpush1.msra.mxu0 %v276
    %416 = vmatprep.subr.mxu0 %v279
    %417 = vmatpush1.msra.mxu0 %v278
    %418 = vmatprep.subr.mxu0 %v281
    %419 = vmatpush1.msra.mxu0 %v280
    %420 = vmatprep.subr.mxu0 %v283
    %421 = vmatpush1.msra.mxu0 %v282
    %422 = vmatprep.subr.mxu0 %v285
    %423 = vmatpush1.msra.mxu0 %v284
    %424 = vmatprep.subr.mxu0 %v287
    %425 = vmatpush1.msra.mxu0 %v286
    %426 = vmatprep.subr.mxu0 %v289
    %427 = vmatpush1.msra.mxu0 %v288
    %428 = vmatprep.subr.mxu0 0.0
    %429 = vmatpush1.msra.mxu0 0.0
    %430 = vmatprep.subr.mxu0 0.0
    %431 = vmatpush1.msra.mxu0 0.0
    %432 = vmatprep.subr.mxu0 0.0
    %433 = vmatpush1.msra.mxu0 0.0
    %434 = vmatprep.subr.mxu0 0.0
    %435 = vmatpush1.msra.mxu0 0.0
    %436 = vmatprep.subr.mxu0 0.0
    %437 = vmatpush1.msra.mxu0 0.0
    %438 = vmatprep.subr.mxu0 0.0
    %439 = vmatpush1.msra.mxu0 0.0
    %440 = vmatprep.subr.mxu0 0.0
    %441 = vmatpush1.msra.mxu0 0.0
    %442 = vmatprep.subr.mxu0 0.0
    %443 = vmatpush1.msra.mxu0 0.0
    %444 = vmatprep.subr.mxu0 0.0
    %445 = vmatpush1.msra.mxu0 0.0
    %446 = vmatprep.subr.mxu0 0.0
    %447 = vmatpush1.msra.mxu0 0.0
    %448 = vmatprep.subr.mxu0 0.0
    %449 = vmatpush1.msra.mxu0 0.0
    %450 = vmatprep.subr.mxu0 0.0
    %451 = vmatpush1.msra.mxu0 0.0
    %452 = vmatprep.subr.mxu0 0.0
    %453 = vmatpush1.msra.mxu0 0.0
    %454 = vmatprep.subr.mxu0 0.0
    %455 = vmatpush1.msra.mxu0 0.0
    %456 = vmatprep.subr.mxu0 0.0
    %457 = vmatpush1.msra.mxu0 0.0
    %458 = vmatprep.subr.mxu0 0.0
    %459 = vmatpush1.msra.mxu0 0.0
    %460 = vmatprep.subr.mxu0 0.0
    %461 = vmatpush1.msra.mxu0 0.0
    %462 = vmatprep.subr.mxu0 0.0
    %463 = vmatpush1.msra.mxu0 0.0
    %464 = vmatprep.subr.mxu0 0.0
    %465 = vmatpush1.msra.mxu0 0.0
    %466 = vmatprep.subr.mxu0 0.0
    %467 = vmatpush1.msra.mxu0 0.0
    %468 = vmatprep.subr.mxu0 0.0
    %469 = vmatpush1.msra.mxu0 0.0
    %470 = vmatprep.subr.mxu0 0.0
    %471 = vmatpush1.msra.mxu0 0.0
    %472 = vmatprep.subr.mxu0 0.0
    %473 = vmatpush1.msra.mxu0 0.0
    %474 = vmatprep.subr.mxu0 0.0
    %475 = vmatpush1.msra.mxu0 0.0
    %476 = vmatprep.mubr.f32.mxu0 0.0
    %477 = vmatmul.mubr.f32.gmra.mrb[0].mxu0 %v410
    %v478 = vpop.f32.mrb[0].mxu0
    %v479 = vadd.f32 0.0, %v478
    %v480 = vpop.f32.mrb[0].mxu0
    %v481 = vadd.f32 0.0, %v480
    %482 = vdwg.mxu0
    %v483 = vadd.f32 %v407, %v479
    %v484 = vadd.f32 %v408, %v481
    %v485 = vxor.u32 %v483, 2147483648
    %v486 = vxor.u32 %v484, 2147483648
    %v487 = vmul.f32 %v485, 1.442695
    %v488 = vpow.pop %v487
    %v489 = vmul.f32 %v486, 1.442695
    %v490 = vpow.pop %v489
    %v491 = vadd.f32 %v488, 1.0
    %v492 = vadd.f32 %v490, 1.0
    %v493 = vrcp.pop %v491
    %v494 = vmul.f32 1.0, %v493
    %v495 = vrcp.pop %v492
    %v496 = vmul.f32 1.0, %v495
    %v497 = vtanh.pop %v484
    %v498 = vmul.f32 %v494, %v396
    %500 = vrot.lane.b32.xlu0 %v497, 64
    %v501 = vpop.permute.xlu0 %500
    %v503 = vmul.f32 %v494, %v501
    %505 = vrot.lane.b32.xlu0 %v503, 64
    %v506 = vpop.permute.xlu0 %505
    %v508 = vadd.f32 %v498, %v506
    %v509 = vtanh.pop %v508
    %511 = vrot.lane.b32.xlu0 %v509, 64
    %v512 = vpop.permute.xlu0 %511
    %v514 = vmul.f32 %v496, %v512
    %v515 = vld [vmem:[#allocation2 + $0x20] sm:$0xff]
    %v516 = vld [vmem:[#allocation2 + $0x28] sm:$0xff]
    %v517 = vld [vmem:[#allocation2 + $0x50] sm:$0xff]
    %v518 = vld [vmem:[#allocation2 + $0x58] sm:$0xff]
    %v519 = vsel %vm94, %v515, %v517
    %v520 = vsel %vm95, %v516, %v518
    %v522 = vsel %vm296, %v514, 0
    %524 = vmatprep.subr.mxu0 %v275
    %525 = vmatpush1.msra.mxu0 %v274
    %526 = vmatprep.subr.mxu0 %v277
    %527 = vmatpush1.msra.mxu0 %v276
    %528 = vmatprep.subr.mxu0 %v279
    %529 = vmatpush1.msra.mxu0 %v278
    %530 = vmatprep.subr.mxu0 %v281
    %531 = vmatpush1.msra.mxu0 %v280
    %532 = vmatprep.subr.mxu0 %v283
    %533 = vmatpush1.msra.mxu0 %v282
    %534 = vmatprep.subr.mxu0 %v285
    %535 = vmatpush1.msra.mxu0 %v284
    %536 = vmatprep.subr.mxu0 %v287
    %537 = vmatpush1.msra.mxu0 %v286
    %538 = vmatprep.subr.mxu0 %v289
    %539 = vmatpush1.msra.mxu0 %v288
    %540 = vmatprep.subr.mxu0 0.0
    %541 = vmatpush1.msra.mxu0 0.0
    %542 = vmatprep.subr.mxu0 0.0
    %543 = vmatpush1.msra.mxu0 0.0
    %544 = vmatprep.subr.mxu0 0.0
    %545 = vmatpush1.msra.mxu0 0.0
    %546 = vmatprep.subr.mxu0 0.0
    %547 = vmatpush1.msra.mxu0 0.0
    %548 = vmatprep.subr.mxu0 0.0
    %549 = vmatpush1.msra.mxu0 0.0
    %550 = vmatprep.subr.mxu0 0.0
    %551 = vmatpush1.msra.mxu0 0.0
    %552 = vmatprep.subr.mxu0 0.0
    %553 = vmatpush1.msra.mxu0 0.0
    %554 = vmatprep.subr.mxu0 0.0
    %555 = vmatpush1.msra.mxu0 0.0
    %556 = vmatprep.subr.mxu0 0.0
    %557 = vmatpush1.msra.mxu0 0.0
    %558 = vmatprep.subr.mxu0 0.0
    %559 = vmatpush1.msra.mxu0 0.0
    %560 = vmatprep.subr.mxu0 0.0
    %561 = vmatpush1.msra.mxu0 0.0
    %562 = vmatprep.subr.mxu0 0.0
    %563 = vmatpush1.msra.mxu0 0.0
    %564 = vmatprep.subr.mxu0 0.0
    %565 = vmatpush1.msra.mxu0 0.0
    %566 = vmatprep.subr.mxu0 0.0
    %567 = vmatpush1.msra.mxu0 0.0
    %568 = vmatprep.subr.mxu0 0.0
    %569 = vmatpush1.msra.mxu0 0.0
    %570 = vmatprep.subr.mxu0 0.0
    %571 = vmatpush1.msra.mxu0 0.0
    %572 = vmatprep.subr.mxu0 0.0
    %573 = vmatpush1.msra.mxu0 0.0
    %574 = vmatprep.subr.mxu0 0.0
    %575 = vmatpush1.msra.mxu0 0.0
    %576 = vmatprep.subr.mxu0 0.0
    %577 = vmatpush1.msra.mxu0 0.0
    %578 = vmatprep.subr.mxu0 0.0
    %579 = vmatpush1.msra.mxu0 0.0
    %580 = vmatprep.subr.mxu0 0.0
    %581 = vmatpush1.msra.mxu0 0.0
    %582 = vmatprep.subr.mxu0 0.0
    %583 = vmatpush1.msra.mxu0 0.0
    %584 = vmatprep.subr.mxu0 0.0
    %585 = vmatpush1.msra.mxu0 0.0
    %586 = vmatprep.subr.mxu0 0.0
    %587 = vmatpush1.msra.mxu0 0.0
    %588 = vmatprep.mubr.f32.mxu0 0.0
    %589 = vmatmul.mubr.f32.gmra.mrb[0].mxu0 %v522
    %v590 = vpop.f32.mrb[0].mxu0
    %v591 = vadd.f32 0.0, %v590
    %v592 = vpop.f32.mrb[0].mxu0
    %v593 = vadd.f32 0.0, %v592
    %594 = vdwg.mxu0
    %v595 = vadd.f32 %v519, %v591
    %v596 = vadd.f32 %v520, %v593
    %v597 = vxor.u32 %v595, 2147483648
    %v598 = vxor.u32 %v596, 2147483648
    %v599 = vmul.f32 %v597, 1.442695
    %v600 = vpow.pop %v599
    %v601 = vmul.f32 %v598, 1.442695
    %v602 = vpow.pop %v601
    %v603 = vadd.f32 %v600, 1.0
    %v604 = vadd.f32 %v602, 1.0
    %v605 = vrcp.pop %v603
    %v606 = vmul.f32 1.0, %v605
    %v607 = vrcp.pop %v604
    %v608 = vmul.f32 1.0, %v607
    %v609 = vtanh.pop %v596
    %v610 = vmul.f32 %v606, %v508
    %612 = vrot.lane.b32.xlu0 %v609, 64
    %v613 = vpop.permute.xlu0 %612
    %v615 = vmul.f32 %v606, %v613
    %617 = vrot.lane.b32.xlu0 %v615, 64
    %v618 = vpop.permute.xlu0 %617
    %v620 = vadd.f32 %v610, %v618
    %v621 = vtanh.pop %v620
    %623 = vrot.lane.b32.xlu0 %v621, 64
    %v624 = vpop.permute.xlu0 %623
    %v626 = vmul.f32 %v608, %v624
    %v627 = vld [vmem:[#allocation2 + $0x30] sm:$0xff]
    %v628 = vld [vmem:[#allocation2 + $0x38] sm:$0xff]
    %v629 = vld [vmem:[#allocation2 + $0x40] sm:$0xff]
    %v630 = vld [vmem:[#allocation2 + $0x48] sm:$0xff]
    %v631 = vsel %vm94, %v627, %v629
    %v632 = vsel %vm95, %v628, %v630
    %v634 = vsel %vm296, %v626, 0
    %636 = vmatprep.subr.mxu0 %v275
    %637 = vmatpush1.msra.mxu0 %v274
    %638 = vmatprep.subr.mxu0 %v277
    %639 = vmatpush1.msra.mxu0 %v276
    %640 = vmatprep.subr.mxu0 %v279
    %641 = vmatpush1.msra.mxu0 %v278
    %642 = vmatprep.subr.mxu0 %v281
    %643 = vmatpush1.msra.mxu0 %v280
    %644 = vmatprep.subr.mxu0 %v283
    %645 = vmatpush1.msra.mxu0 %v282
    %646 = vmatprep.subr.mxu0 %v285
    %647 = vmatpush1.msra.mxu0 %v284
    %648 = vmatprep.subr.mxu0 %v287
    %649 = vmatpush1.msra.mxu0 %v286
    %650 = vmatprep.subr.mxu0 %v289
    %651 = vmatpush1.msra.mxu0 %v288
    %652 = vmatprep.subr.mxu0 0.0
    %653 = vmatpush1.msra.mxu0 0.0
    %654 = vmatprep.subr.mxu0 0.0
    %655 = vmatpush1.msra.mxu0 0.0
    %656 = vmatprep.subr.mxu0 0.0
    %657 = vmatpush1.msra.mxu0 0.0
    %658 = vmatprep.subr.mxu0 0.0
    %659 = vmatpush1.msra.mxu0 0.0
    %660 = vmatprep.subr.mxu0 0.0
    %661 = vmatpush1.msra.mxu0 0.0
    %662 = vmatprep.subr.mxu0 0.0
    %663 = vmatpush1.msra.mxu0 0.0
    %664 = vmatprep.subr.mxu0 0.0
    %665 = vmatpush1.msra.mxu0 0.0
    %666 = vmatprep.subr.mxu0 0.0
    %667 = vmatpush1.msra.mxu0 0.0
    %668 = vmatprep.subr.mxu0 0.0
    %669 = vmatpush1.msra.mxu0 0.0
    %670 = vmatprep.subr.mxu0 0.0
    %671 = vmatpush1.msra.mxu0 0.0
    %672 = vmatprep.subr.mxu0 0.0
    %673 = vmatpush1.msra.mxu0 0.0
    %674 = vmatprep.subr.mxu0 0.0
    %675 = vmatpush1.msra.mxu0 0.0
    %676 = vmatprep.subr.mxu0 0.0
    %677 = vmatpush1.msra.mxu0 0.0
    %678 = vmatprep.subr.mxu0 0.0
    %679 = vmatpush1.msra.mxu0 0.0
    %680 = vmatprep.subr.mxu0 0.0
    %681 = vmatpush1.msra.mxu0 0.0
    %682 = vmatprep.subr.mxu0 0.0
    %683 = vmatpush1.msra.mxu0 0.0
    %684 = vmatprep.subr.mxu0 0.0
    %685 = vmatpush1.msra.mxu0 0.0
    %686 = vmatprep.subr.mxu0 0.0
    %687 = vmatpush1.msra.mxu0 0.0
    %688 = vmatprep.subr.mxu0 0.0
    %689 = vmatpush1.msra.mxu0 0.0
    %690 = vmatprep.subr.mxu0 0.0
    %691 = vmatpush1.msra.mxu0 0.0
    %692 = vmatprep.subr.mxu0 0.0
    %693 = vmatpush1.msra.mxu0 0.0
    %694 = vmatprep.subr.mxu0 0.0
    %695 = vmatpush1.msra.mxu0 0.0
    %696 = vmatprep.subr.mxu0 0.0
    %697 = vmatpush1.msra.mxu0 0.0
    %698 = vmatprep.subr.mxu0 0.0
    %699 = vmatpush1.msra.mxu0 0.0
    %700 = vmatprep.mubr.f32.mxu0 0.0
    %701 = vmatmul.mubr.f32.gmra.mrb[0].mxu0 %v634
    %v702 = vpop.f32.mrb[0].mxu0
    %v703 = vadd.f32 0.0, %v702
    %v704 = vpop.f32.mrb[0].mxu0
    %v705 = vadd.f32 0.0, %v704
    %706 = vdwg.mxu0
    %v707 = vadd.f32 %v631, %v703
    %v708 = vadd.f32 %v632, %v705
    %v709 = vxor.u32 %v707, 2147483648
    %v710 = vxor.u32 %v708, 2147483648
    %v711 = vmul.f32 %v709, 1.442695
    %v712 = vpow.pop %v711
    %v713 = vmul.f32 %v710, 1.442695
    %v714 = vpow.pop %v713
    %v715 = vadd.f32 %v712, 1.0
    %v716 = vadd.f32 %v714, 1.0
    %v717 = vrcp.pop %v715
    %v718 = vmul.f32 1.0, %v717
    %v719 = vrcp.pop %v716
    %v720 = vmul.f32 1.0, %v719
    %v721 = vtanh.pop %v708
    %v722 = vmul.f32 %v718, %v620
    %724 = vrot.lane.b32.xlu0 %v721, 64
    %v725 = vpop.permute.xlu0 %724
    %v727 = vmul.f32 %v718, %v725
    %729 = vrot.lane.b32.xlu0 %v727, 64
    %v730 = vpop.permute.xlu0 %729
    %v732 = vadd.f32 %v722, %v730
    %v733 = vtanh.pop %v732
    %735 = vrot.lane.b32.xlu0 %v733, 64
    %v736 = vpop.permute.xlu0 %735
    %v738 = vmul.f32 %v720, %v736
    %v739 = vsel %vm94, %v629, %v627
    %v740 = vsel %vm95, %v630, %v628
    %v742 = vsel %vm296, %v738, 0
    %744 = vmatprep.subr.mxu0 %v275
    %745 = vmatpush1.msra.mxu0 %v274
    %746 = vmatprep.subr.mxu0 %v277
    %747 = vmatpush1.msra.mxu0 %v276
    %748 = vmatprep.subr.mxu0 %v279
    %749 = vmatpush1.msra.mxu0 %v278
    %750 = vmatprep.subr.mxu0 %v281
    %751 = vmatpush1.msra.mxu0 %v280
    %752 = vmatprep.subr.mxu0 %v283
    %753 = vmatpush1.msra.mxu0 %v282
    %754 = vmatprep.subr.mxu0 %v285
    %755 = vmatpush1.msra.mxu0 %v284
    %756 = vmatprep.subr.mxu0 %v287
    %757 = vmatpush1.msra.mxu0 %v286
    %758 = vmatprep.subr.mxu0 %v289
    %759 = vmatpush1.msra.mxu0 %v288
    %760 = vmatprep.subr.mxu0 0.0
    %761 = vmatpush1.msra.mxu0 0.0
    %762 = vmatprep.subr.mxu0 0.0
    %763 = vmatpush1.msra.mxu0 0.0
    %764 = vmatprep.subr.mxu0 0.0
    %765 = vmatpush1.msra.mxu0 0.0
    %766 = vmatprep.subr.mxu0 0.0
    %767 = vmatpush1.msra.mxu0 0.0
    %768 = vmatprep.subr.mxu0 0.0
    %769 = vmatpush1.msra.mxu0 0.0
    %770 = vmatprep.subr.mxu0 0.0
    %771 = vmatpush1.msra.mxu0 0.0
    %772 = vmatprep.subr.mxu0 0.0
    %773 = vmatpush1.msra.mxu0 0.0
    %774 = vmatprep.subr.mxu0 0.0
    %775 = vmatpush1.msra.mxu0 0.0
    %776 = vmatprep.subr.mxu0 0.0
    %777 = vmatpush1.msra.mxu0 0.0
    %778 = vmatprep.subr.mxu0 0.0
    %779 = vmatpush1.msra.mxu0 0.0
    %780 = vmatprep.subr.mxu0 0.0
    %781 = vmatpush1.msra.mxu0 0.0
    %782 = vmatprep.subr.mxu0 0.0
    %783 = vmatpush1.msra.mxu0 0.0
    %784 = vmatprep.subr.mxu0 0.0
    %785 = vmatpush1.msra.mxu0 0.0
    %786 = vmatprep.subr.mxu0 0.0
    %787 = vmatpush1.msra.mxu0 0.0
    %788 = vmatprep.subr.mxu0 0.0
    %789 = vmatpush1.msra.mxu0 0.0
    %790 = vmatprep.subr.mxu0 0.0
    %791 = vmatpush1.msra.mxu0 0.0
    %792 = vmatprep.subr.mxu0 0.0
    %793 = vmatpush1.msra.mxu0 0.0
    %794 = vmatprep.subr.mxu0 0.0
    %795 = vmatpush1.msra.mxu0 0.0
    %796 = vmatprep.subr.mxu0 0.0
    %797 = vmatpush1.msra.mxu0 0.0
    %798 = vmatprep.subr.mxu0 0.0
    %799 = vmatpush1.msra.mxu0 0.0
    %800 = vmatprep.subr.mxu0 0.0
    %801 = vmatpush1.msra.mxu0 0.0
    %802 = vmatprep.subr.mxu0 0.0
    %803 = vmatpush1.msra.mxu0 0.0
    %804 = vmatprep.subr.mxu0 0.0
    %805 = vmatpush1.msra.mxu0 0.0
    %806 = vmatprep.subr.mxu0 0.0
    %807 = vmatpush1.msra.mxu0 0.0
    %808 = vmatprep.mubr.f32.mxu0 0.0
    %809 = vmatmul.mubr.f32.gmra.mrb[0].mxu0 %v742
    %v810 = vpop.f32.mrb[0].mxu0
    %v811 = vadd.f32 0.0, %v810
    %v812 = vpop.f32.mrb[0].mxu0
    %v813 = vadd.f32 0.0, %v812
    %814 = vdwg.mxu0
    %v815 = vadd.f32 %v739, %v811
    %v816 = vadd.f32 %v740, %v813
    %v817 = vxor.u32 %v815, 2147483648
    %v818 = vxor.u32 %v816, 2147483648
    %v819 = vmul.f32 %v817, 1.442695
    %v820 = vpow.pop %v819
    %v821 = vmul.f32 %v818, 1.442695
    %v822 = vpow.pop %v821
    %v823 = vadd.f32 %v820, 1.0
    %v824 = vadd.f32 %v822, 1.0
    %v825 = vrcp.pop %v823
    %v826 = vmul.f32 1.0, %v825
    %v827 = vrcp.pop %v824
    %v828 = vmul.f32 1.0, %v827
    %v829 = vtanh.pop %v816
    %v830 = vmul.f32 %v826, %v732
    %832 = vrot.lane.b32.xlu0 %v829, 64
    %v833 = vpop.permute.xlu0 %832
    %v835 = vmul.f32 %v826, %v833
    %837 = vrot.lane.b32.xlu0 %v835, 64
    %v838 = vpop.permute.xlu0 %837
    %v840 = vadd.f32 %v830, %v838
    %v841 = vtanh.pop %v840
    %843 = vrot.lane.b32.xlu0 %v841, 64
    %v844 = vpop.permute.xlu0 %843
    %v846 = vmul.f32 %v828, %v844
    %v847 = vsel %vm94, %v517, %v515
    %v848 = vsel %vm95, %v518, %v516
    %v850 = vsel %vm296, %v846, 0
    %852 = vmatprep.subr.mxu0 %v275
    %853 = vmatpush1.msra.mxu0 %v274
    %854 = vmatprep.subr.mxu0 %v277
    %855 = vmatpush1.msra.mxu0 %v276
    %856 = vmatprep.subr.mxu0 %v279
    %857 = vmatpush1.msra.mxu0 %v278
    %858 = vmatprep.subr.mxu0 %v281
    %859 = vmatpush1.msra.mxu0 %v280
    %860 = vmatprep.subr.mxu0 %v283
    %861 = vmatpush1.msra.mxu0 %v282
    %862 = vmatprep.subr.mxu0 %v285
    %863 = vmatpush1.msra.mxu0 %v284
    %864 = vmatprep.subr.mxu0 %v287
    %865 = vmatpush1.msra.mxu0 %v286
    %866 = vmatprep.subr.mxu0 %v289
    %867 = vmatpush1.msra.mxu0 %v288
    %868 = vmatprep.subr.mxu0 0.0
    %869 = vmatpush1.msra.mxu0 0.0
    %870 = vmatprep.subr.mxu0 0.0
    %871 = vmatpush1.msra.mxu0 0.0
    %872 = vmatprep.subr.mxu0 0.0
    %873 = vmatpush1.msra.mxu0 0.0
    %874 = vmatprep.subr.mxu0 0.0
    %875 = vmatpush1.msra.mxu0 0.0
    %876 = vmatprep.subr.mxu0 0.0
    %877 = vmatpush1.msra.mxu0 0.0
    %878 = vmatprep.subr.mxu0 0.0
    %879 = vmatpush1.msra.mxu0 0.0
    %880 = vmatprep.subr.mxu0 0.0
    %881 = vmatpush1.msra.mxu0 0.0
    %882 = vmatprep.subr.mxu0 0.0
    %883 = vmatpush1.msra.mxu0 0.0
    %884 = vmatprep.subr.mxu0 0.0
    %885 = vmatpush1.msra.mxu0 0.0
    %886 = vmatprep.subr.mxu0 0.0
    %887 = vmatpush1.msra.mxu0 0.0
    %888 = vmatprep.subr.mxu0 0.0
    %889 = vmatpush1.msra.mxu0 0.0
    %890 = vmatprep.subr.mxu0 0.0
    %891 = vmatpush1.msra.mxu0 0.0
    %892 = vmatprep.subr.mxu0 0.0
    %893 = vmatpush1.msra.mxu0 0.0
    %894 = vmatprep.subr.mxu0 0.0
    %895 = vmatpush1.msra.mxu0 0.0
    %896 = vmatprep.subr.mxu0 0.0
    %897 = vmatpush1.msra.mxu0 0.0
    %898 = vmatprep.subr.mxu0 0.0
    %899 = vmatpush1.msra.mxu0 0.0
    %900 = vmatprep.subr.mxu0 0.0
    %901 = vmatpush1.msra.mxu0 0.0
    %902 = vmatprep.subr.mxu0 0.0
    %903 = vmatpush1.msra.mxu0 0.0
    %904 = vmatprep.subr.mxu0 0.0
    %905 = vmatpush1.msra.mxu0 0.0
    %906 = vmatprep.subr.mxu0 0.0
    %907 = vmatpush1.msra.mxu0 0.0
    %908 = vmatprep.subr.mxu0 0.0
    %909 = vmatpush1.msra.mxu0 0.0
    %910 = vmatprep.subr.mxu0 0.0
    %911 = vmatpush1.msra.mxu0 0.0
    %912 = vmatprep.subr.mxu0 0.0
    %913 = vmatpush1.msra.mxu0 0.0
    %914 = vmatprep.subr.mxu0 0.0
    %915 = vmatpush1.msra.mxu0 0.0
    %916 = vmatprep.mubr.f32.mxu0 0.0
    %917 = vmatmul.mubr.f32.gmra.mrb[0].mxu0 %v850
    %v918 = vpop.f32.mrb[0].mxu0
    %v919 = vadd.f32 0.0, %v918
    %v920 = vpop.f32.mrb[0].mxu0
    %v921 = vadd.f32 0.0, %v920
    %922 = vdwg.mxu0
    %v923 = vadd.f32 %v847, %v919
    %v924 = vadd.f32 %v848, %v921
    %v925 = vxor.u32 %v923, 2147483648
    %v926 = vxor.u32 %v924, 2147483648
    %v927 = vmul.f32 %v925, 1.442695
    %v928 = vpow.pop %v927
    %v929 = vmul.f32 %v926, 1.442695
    %v930 = vpow.pop %v929
    %v931 = vadd.f32 %v928, 1.0
    %v932 = vadd.f32 %v930, 1.0
    %v933 = vrcp.pop %v931
    %v934 = vmul.f32 1.0, %v933
    %v935 = vrcp.pop %v932
    %v936 = vmul.f32 1.0, %v935
    %v937 = vtanh.pop %v924
    %v938 = vmul.f32 %v934, %v840
    %940 = vrot.lane.b32.xlu0 %v937, 64
    %v941 = vpop.permute.xlu0 %940
    %v943 = vmul.f32 %v934, %v941
    %945 = vrot.lane.b32.xlu0 %v943, 64
    %v946 = vpop.permute.xlu0 %945
    %v948 = vadd.f32 %v938, %v946
    %v949 = vtanh.pop %v948
    %951 = vrot.lane.b32.xlu0 %v949, 64
    %v952 = vpop.permute.xlu0 %951
    %v954 = vmul.f32 %v936, %v952
    %v955 = vsel %vm94, %v405, %v403
    %v956 = vsel %vm95, %v406, %v404
    %v958 = vsel %vm296, %v954, 0
    %960 = vmatprep.subr.mxu0 %v275
    %961 = vmatpush1.msra.mxu0 %v274
    %962 = vmatprep.subr.mxu0 %v277
    %963 = vmatpush1.msra.mxu0 %v276
    %964 = vmatprep.subr.mxu0 %v279
    %965 = vmatpush1.msra.mxu0 %v278
    %966 = vmatprep.subr.mxu0 %v281
    %967 = vmatpush1.msra.mxu0 %v280
    %968 = vmatprep.subr.mxu0 %v283
    %969 = vmatpush1.msra.mxu0 %v282
    %970 = vmatprep.subr.mxu0 %v285
    %971 = vmatpush1.msra.mxu0 %v284
    %972 = vmatprep.subr.mxu0 %v287
    %973 = vmatpush1.msra.mxu0 %v286
    %974 = vmatprep.subr.mxu0 %v289
    %975 = vmatpush1.msra.mxu0 %v288
    %976 = vmatprep.subr.mxu0 0.0
    %977 = vmatpush1.msra.mxu0 0.0
    %978 = vmatprep.subr.mxu0 0.0
    %979 = vmatpush1.msra.mxu0 0.0
    %980 = vmatprep.subr.mxu0 0.0
    %981 = vmatpush1.msra.mxu0 0.0
    %982 = vmatprep.subr.mxu0 0.0
    %983 = vmatpush1.msra.mxu0 0.0
    %984 = vmatprep.subr.mxu0 0.0
    %985 = vmatpush1.msra.mxu0 0.0
    %986 = vmatprep.subr.mxu0 0.0
    %987 = vmatpush1.msra.mxu0 0.0
    %988 = vmatprep.subr.mxu0 0.0
    %989 = vmatpush1.msra.mxu0 0.0
    %990 = vmatprep.subr.mxu0 0.0
    %991 = vmatpush1.msra.mxu0 0.0
    %992 = vmatprep.subr.mxu0 0.0
    %993 = vmatpush1.msra.mxu0 0.0
    %994 = vmatprep.subr.mxu0 0.0
    %995 = vmatpush1.msra.mxu0 0.0
    %996 = vmatprep.subr.mxu0 0.0
    %997 = vmatpush1.msra.mxu0 0.0
    %998 = vmatprep.subr.mxu0 0.0
    %999 = vmatpush1.msra.mxu0 0.0
    %1000 = vmatprep.subr.mxu0 0.0
    %1001 = vmatpush1.msra.mxu0 0.0
    %1002 = vmatprep.subr.mxu0 0.0
    %1003 = vmatpush1.msra.mxu0 0.0
    %1004 = vmatprep.subr.mxu0 0.0
    %1005 = vmatpush1.msra.mxu0 0.0
    %1006 = vmatprep.subr.mxu0 0.0
    %1007 = vmatpush1.msra.mxu0 0.0
    %1008 = vmatprep.subr.mxu0 0.0
    %1009 = vmatpush1.msra.mxu0 0.0
    %1010 = vmatprep.subr.mxu0 0.0
    %1011 = vmatpush1.msra.mxu0 0.0
    %1012 = vmatprep.subr.mxu0 0.0
    %1013 = vmatpush1.msra.mxu0 0.0
    %1014 = vmatprep.subr.mxu0 0.0
    %1015 = vmatpush1.msra.mxu0 0.0
    %1016 = vmatprep.subr.mxu0 0.0
    %1017 = vmatpush1.msra.mxu0 0.0
    %1018 = vmatprep.subr.mxu0 0.0
    %1019 = vmatpush1.msra.mxu0 0.0
    %1020 = vmatprep.subr.mxu0 0.0
    %1021 = vmatpush1.msra.mxu0 0.0
    %1022 = vmatprep.subr.mxu0 0.0
    %1023 = vmatpush1.msra.mxu0 0.0
    %1024 = vmatprep.mubr.f32.mxu0 0.0
    %1025 = vmatmul.mubr.f32.gmra.mrb[0].mxu0 %v958
    %v1026 = vpop.f32.mrb[0].mxu0
    %v1027 = vadd.f32 0.0, %v1026
    %v1028 = vpop.f32.mrb[0].mxu0
    %v1029 = vadd.f32 0.0, %v1028
    %1030 = vdwg.mxu0
    %v1031 = vadd.f32 %v955, %v1027
    %v1032 = vadd.f32 %v956, %v1029
    %v1033 = vxor.u32 %v1031, 2147483648
    %v1034 = vxor.u32 %v1032, 2147483648
    %v1035 = vmul.f32 %v1033, 1.442695
    %v1036 = vpow.pop %v1035
    %v1037 = vmul.f32 %v1034, 1.442695
    %v1038 = vpow.pop %v1037
    %v1039 = vadd.f32 %v1036, 1.0
    %v1040 = vadd.f32 %v1038, 1.0
    %v1041 = vrcp.pop %v1039
    %v1042 = vmul.f32 1.0, %v1041
    %v1043 = vrcp.pop %v1040
    %v1044 = vmul.f32 1.0, %v1043
    %v1045 = vtanh.pop %v1032
    %v1046 = vmul.f32 %v1042, %v948
    %1048 = vrot.lane.b32.xlu0 %v1045, 64
    %v1049 = vpop.permute.xlu0 %1048
    %v1051 = vmul.f32 %v1042, %v1049
    %1053 = vrot.lane.b32.xlu0 %v1051, 64
    %v1054 = vpop.permute.xlu0 %1053
    %v1056 = vadd.f32 %v1046, %v1054
    %v1057 = vtanh.pop %v1056
    %1059 = vrot.lane.b32.xlu0 %v1057, 64
    %v1060 = vpop.permute.xlu0 %1059
    %v1062 = vmul.f32 %v1044, %v1060
    %v1063 = vsel %vm94, %v292, %v290
    %v1064 = vsel %vm95, %v293, %v291
    %v1066 = vsel %vm296, %v1062, 0
    %1068 = vmatprep.subr.mxu0 %v275
    %1069 = vmatpush1.msra.mxu0 %v274
    %1070 = vmatprep.subr.mxu0 %v277
    %1071 = vmatpush1.msra.mxu0 %v276
    %1072 = vmatprep.subr.mxu0 %v279
    %1073 = vmatpush1.msra.mxu0 %v278
    %1074 = vmatprep.subr.mxu0 %v281
    %1075 = vmatpush1.msra.mxu0 %v280
    %1076 = vmatprep.subr.mxu0 %v283
    %1077 = vmatpush1.msra.mxu0 %v282
    %1078 = vmatprep.subr.mxu0 %v285
    %1079 = vmatpush1.msra.mxu0 %v284
    %1080 = vmatprep.subr.mxu0 %v287
    %1081 = vmatpush1.msra.mxu0 %v286
    %1082 = vmatprep.subr.mxu0 %v289
    %1083 = vmatpush1.msra.mxu0 %v288
    %1084 = vmatprep.subr.mxu0 0.0
    %1085 = vmatpush1.msra.mxu0 0.0
    %1086 = vmatprep.subr.mxu0 0.0
    %1087 = vmatpush1.msra.mxu0 0.0
    %1088 = vmatprep.subr.mxu0 0.0
    %1089 = vmatpush1.msra.mxu0 0.0
    %1090 = vmatprep.subr.mxu0 0.0
    %1091 = vmatpush1.msra.mxu0 0.0
    %1092 = vmatprep.subr.mxu0 0.0
    %1093 = vmatpush1.msra.mxu0 0.0
    %1094 = vmatprep.subr.mxu0 0.0
    %1095 = vmatpush1.msra.mxu0 0.0
    %1096 = vmatprep.subr.mxu0 0.0
    %1097 = vmatpush1.msra.mxu0 0.0
    %1098 = vmatprep.subr.mxu0 0.0
    %1099 = vmatpush1.msra.mxu0 0.0
    %1100 = vmatprep.subr.mxu0 0.0
    %1101 = vmatpush1.msra.mxu0 0.0
    %1102 = vmatprep.subr.mxu0 0.0
    %1103 = vmatpush1.msra.mxu0 0.0
    %1104 = vmatprep.subr.mxu0 0.0
    %1105 = vmatpush1.msra.mxu0 0.0
    %1106 = vmatprep.subr.mxu0 0.0
    %1107 = vmatpush1.msra.mxu0 0.0
    %1108 = vmatprep.subr.mxu0 0.0
    %1109 = vmatpush1.msra.mxu0 0.0
    %1110 = vmatprep.subr.mxu0 0.0
    %1111 = vmatpush1.msra.mxu0 0.0
    %1112 = vmatprep.subr.mxu0 0.0
    %1113 = vmatpush1.msra.mxu0 0.0
    %1114 = vmatprep.subr.mxu0 0.0
    %1115 = vmatpush1.msra.mxu0 0.0
    %1116 = vmatprep.subr.mxu0 0.0
    %1117 = vmatpush1.msra.mxu0 0.0
    %1118 = vmatprep.subr.mxu0 0.0
    %1119 = vmatpush1.msra.mxu0 0.0
    %1120 = vmatprep.subr.mxu0 0.0
    %1121 = vmatpush1.msra.mxu0 0.0
    %1122 = vmatprep.subr.mxu0 0.0
    %1123 = vmatpush1.msra.mxu0 0.0
    %1124 = vmatprep.subr.mxu0 0.0
    %1125 = vmatpush1.msra.mxu0 0.0
    %1126 = vmatprep.subr.mxu0 0.0
    %1127 = vmatpush1.msra.mxu0 0.0
    %1128 = vmatprep.subr.mxu0 0.0
    %1129 = vmatpush1.msra.mxu0 0.0
    %1130 = vmatprep.subr.mxu0 0.0
    %1131 = vmatpush1.msra.mxu0 0.0
    %1132 = vmatprep.mubr.f32.mxu0 0.0
    %1133 = vmatmul.mubr.f32.gmra.mrb[0].mxu0 %v1066
    %v1134 = vpop.f32.mrb[0].mxu0
    %v1135 = vadd.f32 0.0, %v1134
    %v1136 = vpop.f32.mrb[0].mxu0
    %v1137 = vadd.f32 0.0, %v1136
    %1138 = vdwg.mxu0
    %v1139 = vadd.f32 %v1063, %v1135
    %v1140 = vadd.f32 %v1064, %v1137
    %v1141 = vxor.u32 %v1139, 2147483648
    %v1142 = vxor.u32 %v1140, 2147483648
    %v1143 = vmul.f32 %v1141, 1.442695
    %v1144 = vpow.pop %v1143
    %v1145 = vmul.f32 %v1142, 1.442695
    %v1146 = vpow.pop %v1145
    %v1147 = vadd.f32 %v1144, 1.0
    %v1148 = vadd.f32 %v1146, 1.0
    %v1149 = vrcp.pop %v1147
    %v1150 = vmul.f32 1.0, %v1149
    %v1151 = vrcp.pop %v1148
    %v1152 = vmul.f32 1.0, %v1151
    %v1153 = vtanh.pop %v1140
    %v1154 = vmul.f32 %v1150, %v1056
    %1156 = vrot.lane.b32.xlu0 %v1153, 64
    %v1157 = vpop.permute.xlu0 %1156
    %v1159 = vmul.f32 %v1150, %v1157
    %1161 = vrot.lane.b32.xlu0 %v1159, 64
    %v1162 = vpop.permute.xlu0 %1161
    %v1164 = vadd.f32 %v1154, %v1162
    %v1165 = vtanh.pop %v1164
    %1167 = vrot.lane.b32.xlu0 %v1165, 64
    %v1168 = vpop.permute.xlu0 %1167
    %v1170 = vmul.f32 %v1152, %v1168
    %vm1171 = vcmask 261120
    %v1172 = vsel %vm1171, %v402, %v1170
    %v1173 = vsel %vm1171, %v514, %v1062
    %v1174 = vsel %vm1171, %v626, %v954
    %v1175 = vsel %vm1171, %v738, %v846
    %v1176 = vsel %vm1171, %v846, %v738
    %v1177 = vsel %vm1171, %v954, %v626
    %v1178 = vsel %vm1171, %v1062, %v514
    %v1179 = vsel %vm1171, %v1170, %v402
    %v1180 = vld [vmem:[#allocation5] sm:$0xff]
    %v1181 = vld [vmem:[#allocation5 + $0x8] sm:$0xff]
    %v1182 = vld [vmem:[#allocation5 + $0x10] sm:$0xff]
    %v1183 = vld [vmem:[#allocation5 + $0x18] sm:$0xff]
    %v1184 = vld [vmem:[#allocation5 + $0x20] sm:$0xff]
    %v1185 = vld [vmem:[#allocation5 + $0x28] sm:$0xff]
    %v1186 = vld [vmem:[#allocation5 + $0x30] sm:$0xff]
    %v1187 = vld [vmem:[#allocation5 + $0x38] sm:$0xff]
    %v1188 = vld [vmem:[#allocation5 + $0x40] sm:$0xff]
    %v1189 = vld [vmem:[#allocation5 + $0x48] sm:$0xff]
    %v1190 = vld [vmem:[#allocation5 + $0x50] sm:$0xff]
    %v1191 = vld [vmem:[#allocation5 + $0x58] sm:$0xff]
    %v1192 = vld [vmem:[#allocation5 + $0x60] sm:$0xff]
    %v1193 = vld [vmem:[#allocation5 + $0x68] sm:$0xff]
    %v1194 = vld [vmem:[#allocation5 + $0x70] sm:$0xff]
    %v1195 = vld [vmem:[#allocation5 + $0x78] sm:$0xff]
    %v1196 = vld [vmem:[%s6] sm:$0x3]
    %v1198 = vlaneseq
    %v1199 = vshrl.u32 %v1198, 7
    %v1200 = vsub.s32 0, %v1199
    %v1201 = vrot.slane %v1196, %v1200
    %v1202 = vlaneseq
    %v1203 = vshrl.u32 %v1202, 7
    %v1204 = vsub.s32 1, %v1203
    %v1205 = vrot.slane %v1196, %v1204
    %v1209 = vsel %vm296, %v1172, 0
    %v1212 = vsel %vm296, %v1173, 0
    %v1215 = vsel %vm296, %v1174, 0
    %v1218 = vsel %vm296, %v1175, 0
    %v1221 = vsel %vm296, %v1176, 0
    %v1224 = vsel %vm296, %v1177, 0
    %v1227 = vsel %vm296, %v1178, 0
    %v1230 = vsel %vm296, %v1179, 0
    %1232 = vmatprep.subr.mxu0 %v1181
    %1233 = vmatpush1.msra.mxu0 %v1180
    %1234 = vmatprep.subr.mxu0 %v1183
    %1235 = vmatpush1.msra.mxu0 %v1182
    %1236 = vmatprep.subr.mxu0 %v1185
    %1237 = vmatpush1.msra.mxu0 %v1184
    %1238 = vmatprep.subr.mxu0 %v1187
    %1239 = vmatpush1.msra.mxu0 %v1186
    %1240 = vmatprep.subr.mxu0 %v1189
    %1241 = vmatpush1.msra.mxu0 %v1188
    %1242 = vmatprep.subr.mxu0 %v1191
    %1243 = vmatpush1.msra.mxu0 %v1190
    %1244 = vmatprep.subr.mxu0 %v1193
    %1245 = vmatpush1.msra.mxu0 %v1192
    %1246 = vmatprep.subr.mxu0 %v1195
    %1247 = vmatpush1.msra.mxu0 %v1194
    %1248 = vmatprep.subr.mxu0 0.0
    %1249 = vmatpush1.msra.mxu0 0.0
    %1250 = vmatprep.subr.mxu0 0.0
    %1251 = vmatpush1.msra.mxu0 0.0
    %1252 = vmatprep.subr.mxu0 0.0
    %1253 = vmatpush1.msra.mxu0 0.0
    %1254 = vmatprep.subr.mxu0 0.0
    %1255 = vmatpush1.msra.mxu0 0.0
    %1256 = vmatprep.subr.mxu0 0.0
    %1257 = vmatpush1.msra.mxu0 0.0
    %1258 = vmatprep.subr.mxu0 0.0
    %1259 = vmatpush1.msra.mxu0 0.0
    %1260 = vmatprep.subr.mxu0 0.0
    %1261 = vmatpush1.msra.mxu0 0.0
    %1262 = vmatprep.subr.mxu0 0.0
    %1263 = vmatpush1.msra.mxu0 0.0
    %1264 = vmatprep.subr.mxu0 0.0
    %1265 = vmatpush1.msra.mxu0 0.0
    %1266 = vmatprep.subr.mxu0 0.0
    %1267 = vmatpush1.msra.mxu0 0.0
    %1268 = vmatprep.subr.mxu0 0.0
    %1269 = vmatpush1.msra.mxu0 0.0
    %1270 = vmatprep.subr.mxu0 0.0
    %1271 = vmatpush1.msra.mxu0 0.0
    %1272 = vmatprep.subr.mxu0 0.0
    %1273 = vmatpush1.msra.mxu0 0.0
    %1274 = vmatprep.subr.mxu0 0.0
    %1275 = vmatpush1.msra.mxu0 0.0
    %1276 = vmatprep.subr.mxu0 0.0
    %1277 = vmatpush1.msra.mxu0 0.0
    %1278 = vmatprep.subr.mxu0 0.0
    %1279 = vmatpush1.msra.mxu0 0.0
    %1280 = vmatprep.subr.mxu0 0.0
    %1281 = vmatpush1.msra.mxu0 0.0
    %1282 = vmatprep.subr.mxu0 0.0
    %1283 = vmatpush1.msra.mxu0 0.0
    %1284 = vmatprep.subr.mxu0 0.0
    %1285 = vmatpush1.msra.mxu0 0.0
    %1286 = vmatprep.subr.mxu0 0.0
    %1287 = vmatpush1.msra.mxu0 0.0
    %1288 = vmatprep.subr.mxu0 0.0
    %1289 = vmatpush1.msra.mxu0 0.0
    %1290 = vmatprep.subr.mxu0 0.0
    %1291 = vmatpush1.msra.mxu0 0.0
    %1292 = vmatprep.subr.mxu0 0.0
    %1293 = vmatpush1.msra.mxu0 0.0
    %1294 = vmatprep.subr.mxu0 0.0
    %1295 = vmatpush1.msra.mxu0 0.0
    %1296 = vmatprep.mubr.f32.mxu0 0.0
    %1297 = vmatmul.mubr.f32.gmra.mrb[0].mxu0 %v1209
    %v1298 = vpop.f32.mrb[0].mxu0
    %v1299 = vadd.f32 %v1201, %v1298
    %v1300 = vpop.f32.mrb[0].mxu0
    %v1301 = vadd.f32 %v1205, %v1300
    %1302 = vmatprep.mubr.f32.mxu0 0.0
    %1303 = vmatmul.mubr.f32.gmra.mrb[0].mxu0 %v1212
    %v1304 = vpop.f32.mrb[0].mxu0
    %v1305 = vadd.f32 %v1201, %v1304
    %v1306 = vpop.f32.mrb[0].mxu0
    %v1307 = vadd.f32 %v1205, %v1306
    %1308 = vmatprep.mubr.f32.mxu0 0.0
    %1309 = vmatmul.mubr.f32.gmra.mrb[0].mxu0 %v1215
    %v1310 = vpop.f32.mrb[0].mxu0
    %v1311 = vadd.f32 %v1201, %v1310
    %v1312 = vpop.f32.mrb[0].mxu0
    %v1313 = vadd.f32 %v1205, %v1312
    %1314 = vmatprep.mubr.f32.mxu0 0.0
    %1315 = vmatmul.mubr.f32.gmra.mrb[0].mxu0 %v1218
    %v1316 = vpop.f32.mrb[0].mxu0
    %v1317 = vadd.f32 %v1201, %v1316
    %v1318 = vpop.f32.mrb[0].mxu0
    %v1319 = vadd.f32 %v1205, %v1318
    %1320 = vmatprep.mubr.f32.mxu0 0.0
    %1321 = vmatmul.mubr.f32.gmra.mrb[0].mxu0 %v1221
    %v1322 = vpop.f32.mrb[0].mxu0
    %v1323 = vadd.f32 %v1201, %v1322
    %v1324 = vpop.f32.mrb[0].mxu0
    %v1325 = vadd.f32 %v1205, %v1324
    %1326 = vmatprep.mubr.f32.mxu0 0.0
    %1327 = vmatmul.mubr.f32.gmra.mrb[0].mxu0 %v1224
    %v1328 = vpop.f32.mrb[0].mxu0
    %v1329 = vadd.f32 %v1201, %v1328
    %v1330 = vpop.f32.mrb[0].mxu0
    %v1331 = vadd.f32 %v1205, %v1330
    %1332 = vmatprep.mubr.f32.mxu0 0.0
    %1333 = vmatmul.mubr.f32.gmra.mrb[0].mxu0 %v1227
    %v1334 = vpop.f32.mrb[0].mxu0
    %v1335 = vadd.f32 %v1201, %v1334
    %v1336 = vpop.f32.mrb[0].mxu0
    %v1337 = vadd.f32 %v1205, %v1336
    %1338 = vmatprep.mubr.f32.mxu0 0.0
    %1339 = vmatmul.mubr.f32.gmra.mrb[0].mxu0 %v1230
    %v1340 = vpop.f32.mrb[0].mxu0
    %v1341 = vadd.f32 %v1201, %v1340
    %v1342 = vpop.f32.mrb[0].mxu0
    %v1343 = vadd.f32 %v1205, %v1342
    %1344 = vdwg.mxu0
    %1345 = vst [vmem:[#allocation2] sm:$0xff] %v1299
    %1346 = vst [vmem:[#allocation2 + $0x8] sm:$0xff] %v1301
    %1347 = vst [vmem:[#allocation2 + $0x10] sm:$0xff] %v1305
    %1348 = vst [vmem:[#allocation2 + $0x18] sm:$0xff] %v1307
    %1349 = vst [vmem:[#allocation2 + $0x20] sm:$0xff] %v1311
    %1350 = vst [vmem:[#allocation2 + $0x28] sm:$0xff] %v1313
    %1351 = vst [vmem:[#allocation2 + $0x30] sm:$0xff] %v1317
    %1352 = vst [vmem:[#allocation2 + $0x38] sm:$0xff] %v1319
    %1353 = vst [vmem:[#allocation2 + $0x40] sm:$0xff] %v1323
    %1354 = vst [vmem:[#allocation2 + $0x48] sm:$0xff] %v1325
    %1355 = vst [vmem:[#allocation2 + $0x50] sm:$0xff] %v1329
    %1356 = vst [vmem:[#allocation2 + $0x58] sm:$0xff] %v1331
    %1357 = vst [vmem:[#allocation2 + $0x60] sm:$0xff] %v1335
    %1358 = vst [vmem:[#allocation2 + $0x68] sm:$0xff] %v1337
    %1359 = vst [vmem:[#allocation2 + $0x70] sm:$0xff] %v1341
    %1360 = vst [vmem:[#allocation2 + $0x78] sm:$0xff] %v1343
    %v1361 = vld [vmem:[#allocation7] sm:$0xff]
    %v1362 = vld [vmem:[#allocation7 + $0x8] sm:$0xff]
    %v1363 = vld [vmem:[#allocation7 + $0x10] sm:$0xff]
    %v1364 = vld [vmem:[#allocation7 + $0x18] sm:$0xff]
    %v1365 = vld [vmem:[#allocation7 + $0x20] sm:$0xff]
    %v1366 = vld [vmem:[#allocation7 + $0x28] sm:$0xff]
    %v1367 = vld [vmem:[#allocation7 + $0x30] sm:$0xff]
    %v1368 = vld [vmem:[#allocation7 + $0x38] sm:$0xff]
    %v1369 = vld [vmem:[#allocation7 + $0x40] sm:$0xff]
    %v1370 = vld [vmem:[#allocation7 + $0x48] sm:$0xff]
    %v1371 = vld [vmem:[#allocation7 + $0x50] sm:$0xff]
    %v1372 = vld [vmem:[#allocation7 + $0x58] sm:$0xff]
    %v1373 = vld [vmem:[#allocation7 + $0x60] sm:$0xff]
    %v1374 = vld [vmem:[#allocation7 + $0x68] sm:$0xff]
    %v1375 = vld [vmem:[#allocation7 + $0x70] sm:$0xff]
    %v1376 = vld [vmem:[#allocation7 + $0x78] sm:$0xff]
    %v1377 = vld [vmem:[#allocation2] sm:$0xff]
    %v1378 = vld [vmem:[#allocation2 + $0x8] sm:$0xff]
    %v1379 = vld [vmem:[#allocation2 + $0x70] sm:$0xff]
    %v1380 = vld [vmem:[#allocation2 + $0x78] sm:$0xff]
    %v1381 = vsel %vm94, %v1377, %v1379
    %v1382 = vsel %vm95, %v1378, %v1380
    %1383 = vmatprep.subr.mxu0 %v1362
    %1384 = vmatpush1.msra.mxu0 %v1361
    %1385 = vmatprep.subr.mxu0 %v1364
    %1386 = vmatpush1.msra.mxu0 %v1363
    %1387 = vmatprep.subr.mxu0 %v1366
    %1388 = vmatpush1.msra.mxu0 %v1365
    %1389 = vmatprep.subr.mxu0 %v1368
    %1390 = vmatpush1.msra.mxu0 %v1367
    %1391 = vmatprep.subr.mxu0 %v1370
    %1392 = vmatpush1.msra.mxu0 %v1369
    %1393 = vmatprep.subr.mxu0 %v1372
    %1394 = vmatpush1.msra.mxu0 %v1371
    %1395 = vmatprep.subr.mxu0 %v1374
    %1396 = vmatpush1.msra.mxu0 %v1373
    %1397 = vmatprep.subr.mxu0 %v1376
    %1398 = vmatpush1.msra.mxu0 %v1375
    %1399 = vmatprep.subr.mxu0 0.0
    %1400 = vmatpush1.msra.mxu0 0.0
    %1401 = vmatprep.subr.mxu0 0.0
    %1402 = vmatpush1.msra.mxu0 0.0
    %1403 = vmatprep.subr.mxu0 0.0
    %1404 = vmatpush1.msra.mxu0 0.0
    %1405 = vmatprep.subr.mxu0 0.0
    %1406 = vmatpush1.msra.mxu0 0.0
    %1407 = vmatprep.subr.mxu0 0.0
    %1408 = vmatpush1.msra.mxu0 0.0
    %1409 = vmatprep.subr.mxu0 0.0
    %1410 = vmatpush1.msra.mxu0 0.0
    %1411 = vmatprep.subr.mxu0 0.0
    %1412 = vmatpush1.msra.mxu0 0.0
    %1413 = vmatprep.subr.mxu0 0.0
    %1414 = vmatpush1.msra.mxu0 0.0
    %1415 = vmatprep.subr.mxu0 0.0
    %1416 = vmatpush1.msra.mxu0 0.0
    %1417 = vmatprep.subr.mxu0 0.0
    %1418 = vmatpush1.msra.mxu0 0.0
    %1419 = vmatprep.subr.mxu0 0.0
    %1420 = vmatpush1.msra.mxu0 0.0
    %1421 = vmatprep.subr.mxu0 0.0
    %1422 = vmatpush1.msra.mxu0 0.0
    %1423 = vmatprep.subr.mxu0 0.0
    %1424 = vmatpush1.msra.mxu0 0.0
    %1425 = vmatprep.subr.mxu0 0.0
    %1426 = vmatpush1.msra.mxu0 0.0
    %1427 = vmatprep.subr.mxu0 0.0
    %1428 = vmatpush1.msra.mxu0 0.0
    %1429 = vmatprep.subr.mxu0 0.0
    %1430 = vmatpush1.msra.mxu0 0.0
    %1431 = vmatprep.subr.mxu0 0.0
    %1432 = vmatpush1.msra.mxu0 0.0
    %1433 = vmatprep.subr.mxu0 0.0
    %1434 = vmatpush1.msra.mxu0 0.0
    %1435 = vmatprep.subr.mxu0 0.0
    %1436 = vmatpush1.msra.mxu0 0.0
    %1437 = vmatprep.subr.mxu0 0.0
    %1438 = vmatpush1.msra.mxu0 0.0
    %1439 = vmatprep.subr.mxu0 0.0
    %1440 = vmatpush1.msra.mxu0 0.0
    %1441 = vmatprep.subr.mxu0 0.0
    %1442 = vmatpush1.msra.mxu0 0.0
    %1443 = vmatprep.subr.mxu0 0.0
    %1444 = vmatpush1.msra.mxu0 0.0
    %1445 = vmatprep.subr.mxu0 0.0
    %1446 = vmatpush1.msra.mxu0 0.0
    %1447 = vmatprep.mubr.f32.mxu0 0.0
    %1448 = vmatmul.mubr.f32.gmra.mrb[0].mxu0 %v298
    %v1449 = vpop.f32.mrb[0].mxu0
    %v1450 = vadd.f32 0.0, %v1449
    %v1451 = vpop.f32.mrb[0].mxu0
    %v1452 = vadd.f32 0.0, %v1451
    %1453 = vdwg.mxu0
    %v1454 = vadd.f32 %v1381, %v1450
    %v1455 = vadd.f32 %v1382, %v1452
    %v1456 = vxor.u32 %v1454, 2147483648
    %v1457 = vxor.u32 %v1455, 2147483648
    %v1458 = vmul.f32 %v1456, 1.442695
    %v1459 = vpow.pop %v1458
    %v1460 = vmul.f32 %v1457, 1.442695
    %v1461 = vpow.pop %v1460
    %v1462 = vadd.f32 %v1459, 1.0
    %v1463 = vadd.f32 %v1461, 1.0
    %v1464 = vrcp.pop %v1462
    %v1465 = vmul.f32 1.0, %v1464
    %v1466 = vrcp.pop %v1463
    %v1467 = vmul.f32 1.0, %v1466
    %v1468 = vtanh.pop %v1455
    %v1469 = vmul.f32 %v1465, 0.0
    %1471 = vrot.lane.b32.xlu0 %v1468, 64
    %v1472 = vpop.permute.xlu0 %1471
    %v1474 = vmul.f32 %v1465, %v1472
    %1476 = vrot.lane.b32.xlu0 %v1474, 64
    %v1477 = vpop.permute.xlu0 %1476
    %v1479 = vadd.f32 %v1469, %v1477
    %v1480 = vtanh.pop %v1479
    %1482 = vrot.lane.b32.xlu0 %v1480, 64
    %v1483 = vpop.permute.xlu0 %1482
    %v1485 = vmul.f32 %v1467, %v1483
    %v1486 = vld [vmem:[#allocation2 + $0x10] sm:$0xff]
    %v1487 = vld [vmem:[#allocation2 + $0x18] sm:$0xff]
    %v1488 = vld [vmem:[#allocation2 + $0x60] sm:$0xff]
    %v1489 = vld [vmem:[#allocation2 + $0x68] sm:$0xff]
    %v1490 = vsel %vm94, %v1486, %v1488
    %v1491 = vsel %vm95, %v1487, %v1489
    %v1493 = vsel %vm296, %v1485, 0
    %1495 = vmatprep.subr.mxu0 %v1362
    %1496 = vmatpush1.msra.mxu0 %v1361
    %1497 = vmatprep.subr.mxu0 %v1364
    %1498 = vmatpush1.msra.mxu0 %v1363
    %1499 = vmatprep.subr.mxu0 %v1366
    %1500 = vmatpush1.msra.mxu0 %v1365
    %1501 = vmatprep.subr.mxu0 %v1368
    %1502 = vmatpush1.msra.mxu0 %v1367
    %1503 = vmatprep.subr.mxu0 %v1370
    %1504 = vmatpush1.msra.mxu0 %v1369
    %1505 = vmatprep.subr.mxu0 %v1372
    %1506 = vmatpush1.msra.mxu0 %v1371
    %1507 = vmatprep.subr.mxu0 %v1374
    %1508 = vmatpush1.msra.mxu0 %v1373
    %1509 = vmatprep.subr.mxu0 %v1376
    %1510 = vmatpush1.msra.mxu0 %v1375
    %1511 = vmatprep.subr.mxu0 0.0
    %1512 = vmatpush1.msra.mxu0 0.0
    %1513 = vmatprep.subr.mxu0 0.0
    %1514 = vmatpush1.msra.mxu0 0.0
    %1515 = vmatprep.subr.mxu0 0.0
    %1516 = vmatpush1.msra.mxu0 0.0
    %1517 = vmatprep.subr.mxu0 0.0
    %1518 = vmatpush1.msra.mxu0 0.0
    %1519 = vmatprep.subr.mxu0 0.0
    %1520 = vmatpush1.msra.mxu0 0.0
    %1521 = vmatprep.subr.mxu0 0.0
    %1522 = vmatpush1.msra.mxu0 0.0
    %1523 = vmatprep.subr.mxu0 0.0
    %1524 = vmatpush1.msra.mxu0 0.0
    %1525 = vmatprep.subr.mxu0 0.0
    %1526 = vmatpush1.msra.mxu0 0.0
    %1527 = vmatprep.subr.mxu0 0.0
    %1528 = vmatpush1.msra.mxu0 0.0
    %1529 = vmatprep.subr.mxu0 0.0
    %1530 = vmatpush1.msra.mxu0 0.0
    %1531 = vmatprep.subr.mxu0 0.0
    %1532 = vmatpush1.msra.mxu0 0.0
    %1533 = vmatprep.subr.mxu0 0.0
    %1534 = vmatpush1.msra.mxu0 0.0
    %1535 = vmatprep.subr.mxu0 0.0
    %1536 = vmatpush1.msra.mxu0 0.0
    %1537 = vmatprep.subr.mxu0 0.0
    %1538 = vmatpush1.msra.mxu0 0.0
    %1539 = vmatprep.subr.mxu0 0.0
    %1540 = vmatpush1.msra.mxu0 0.0
    %1541 = vmatprep.subr.mxu0 0.0
    %1542 = vmatpush1.msra.mxu0 0.0
    %1543 = vmatprep.subr.mxu0 0.0
    %1544 = vmatpush1.msra.mxu0 0.0
    %1545 = vmatprep.subr.mxu0 0.0
    %1546 = vmatpush1.msra.mxu0 0.0
    %1547 = vmatprep.subr.mxu0 0.0
    %1548 = vmatpush1.msra.mxu0 0.0
    %1549 = vmatprep.subr.mxu0 0.0
    %1550 = vmatpush1.msra.mxu0 0.0
    %1551 = vmatprep.subr.mxu0 0.0
    %1552 = vmatpush1.msra.mxu0 0.0
    %1553 = vmatprep.subr.mxu0 0.0
    %1554 = vmatpush1.msra.mxu0 0.0
    %1555 = vmatprep.subr.mxu0 0.0
    %1556 = vmatpush1.msra.mxu0 0.0
    %1557 = vmatprep.subr.mxu0 0.0
    %1558 = vmatpush1.msra.mxu0 0.0
    %1559 = vmatprep.mubr.f32.mxu0 0.0
    %1560 = vmatmul.mubr.f32.gmra.mrb[0].mxu0 %v1493
    %v1561 = vpop.f32.mrb[0].mxu0
    %v1562 = vadd.f32 0.0, %v1561
    %v1563 = vpop.f32.mrb[0].mxu0
    %v1564 = vadd.f32 0.0, %v1563
    %1565 = vdwg.mxu0
    %v1566 = vadd.f32 %v1490, %v1562
    %v1567 = vadd.f32 %v1491, %v1564
    %v1568 = vxor.u32 %v1566, 2147483648
    %v1569 = vxor.u32 %v1567, 2147483648
    %v1570 = vmul.f32 %v1568, 1.442695
    %v1571 = vpow.pop %v1570
    %v1572 = vmul.f32 %v1569, 1.442695
    %v1573 = vpow.pop %v1572
    %v1574 = vadd.f32 %v1571, 1.0
    %v1575 = vadd.f32 %v1573, 1.0
    %v1576 = vrcp.pop %v1574
    %v1577 = vmul.f32 1.0, %v1576
    %v1578 = vrcp.pop %v1575
    %v1579 = vmul.f32 1.0, %v1578
    %v1580 = vtanh.pop %v1567
    %v1581 = vmul.f32 %v1577, %v1479
    %1583 = vrot.lane.b32.xlu0 %v1580, 64
    %v1584 = vpop.permute.xlu0 %1583
    %v1586 = vmul.f32 %v1577, %v1584
    %1588 = vrot.lane.b32.xlu0 %v1586, 64
    %v1589 = vpop.permute.xlu0 %1588
    %v1591 = vadd.f32 %v1581, %v1589
    %v1592 = vtanh.pop %v1591
    %1594 = vrot.lane.b32.xlu0 %v1592, 64
    %v1595 = vpop.permute.xlu0 %1594
    %v1597 = vmul.f32 %v1579, %v1595
    %v1598 = vld [vmem:[#allocation2 + $0x20] sm:$0xff]
    %v1599 = vld [vmem:[#allocation2 + $0x28] sm:$0xff]
    %v1600 = vld [vmem:[#allocation2 + $0x50] sm:$0xff]
    %v1601 = vld [vmem:[#allocation2 + $0x58] sm:$0xff]
    %v1602 = vsel %vm94, %v1598, %v1600
    %v1603 = vsel %vm95, %v1599, %v1601
    %v1605 = vsel %vm296, %v1597, 0
    %1607 = vmatprep.subr.mxu0 %v1362
    %1608 = vmatpush1.msra.mxu0 %v1361
    %1609 = vmatprep.subr.mxu0 %v1364
    %1610 = vmatpush1.msra.mxu0 %v1363
    %1611 = vmatprep.subr.mxu0 %v1366
    %1612 = vmatpush1.msra.mxu0 %v1365
    %1613 = vmatprep.subr.mxu0 %v1368
    %1614 = vmatpush1.msra.mxu0 %v1367
    %1615 = vmatprep.subr.mxu0 %v1370
    %1616 = vmatpush1.msra.mxu0 %v1369
    %1617 = vmatprep.subr.mxu0 %v1372
    %1618 = vmatpush1.msra.mxu0 %v1371
    %1619 = vmatprep.subr.mxu0 %v1374
    %1620 = vmatpush1.msra.mxu0 %v1373
    %1621 = vmatprep.subr.mxu0 %v1376
    %1622 = vmatpush1.msra.mxu0 %v1375
    %1623 = vmatprep.subr.mxu0 0.0
    %1624 = vmatpush1.msra.mxu0 0.0
    %1625 = vmatprep.subr.mxu0 0.0
    %1626 = vmatpush1.msra.mxu0 0.0
    %1627 = vmatprep.subr.mxu0 0.0
    %1628 = vmatpush1.msra.mxu0 0.0
    %1629 = vmatprep.subr.mxu0 0.0
    %1630 = vmatpush1.msra.mxu0 0.0
    %1631 = vmatprep.subr.mxu0 0.0
    %1632 = vmatpush1.msra.mxu0 0.0
    %1633 = vmatprep.subr.mxu0 0.0
    %1634 = vmatpush1.msra.mxu0 0.0
    %1635 = vmatprep.subr.mxu0 0.0
    %1636 = vmatpush1.msra.mxu0 0.0
    %1637 = vmatprep.subr.mxu0 0.0
    %1638 = vmatpush1.msra.mxu0 0.0
    %1639 = vmatprep.subr.mxu0 0.0
    %1640 = vmatpush1.msra.mxu0 0.0
    %1641 = vmatprep.subr.mxu0 0.0
    %1642 = vmatpush1.msra.mxu0 0.0
    %1643 = vmatprep.subr.mxu0 0.0
    %1644 = vmatpush1.msra.mxu0 0.0
    %1645 = vmatprep.subr.mxu0 0.0
    %1646 = vmatpush1.msra.mxu0 0.0
    %1647 = vmatprep.subr.mxu0 0.0
    %1648 = vmatpush1.msra.mxu0 0.0
    %1649 = vmatprep.subr.mxu0 0.0
    %1650 = vmatpush1.msra.mxu0 0.0
    %1651 = vmatprep.subr.mxu0 0.0
    %1652 = vmatpush1.msra.mxu0 0.0
    %1653 = vmatprep.subr.mxu0 0.0
    %1654 = vmatpush1.msra.mxu0 0.0
    %1655 = vmatprep.subr.mxu0 0.0
    %1656 = vmatpush1.msra.mxu0 0.0
    %1657 = vmatprep.subr.mxu0 0.0
    %1658 = vmatpush1.msra.mxu0 0.0
    %1659 = vmatprep.subr.mxu0 0.0
    %1660 = vmatpush1.msra.mxu0 0.0
    %1661 = vmatprep.subr.mxu0 0.0
    %1662 = vmatpush1.msra.mxu0 0.0
    %1663 = vmatprep.subr.mxu0 0.0
    %1664 = vmatpush1.msra.mxu0 0.0
    %1665 = vmatprep.subr.mxu0 0.0
    %1666 = vmatpush1.msra.mxu0 0.0
    %1667 = vmatprep.subr.mxu0 0.0
    %1668 = vmatpush1.msra.mxu0 0.0
    %1669 = vmatprep.subr.mxu0 0.0
    %1670 = vmatpush1.msra.mxu0 0.0
    %1671 = vmatprep.mubr.f32.mxu0 0.0
    %1672 = vmatmul.mubr.f32.gmra.mrb[0].mxu0 %v1605
    %v1673 = vpop.f32.mrb[0].mxu0
    %v1674 = vadd.f32 0.0, %v1673
    %v1675 = vpop.f32.mrb[0].mxu0
    %v1676 = vadd.f32 0.0, %v1675
    %1677 = vdwg.mxu0
    %v1678 = vadd.f32 %v1602, %v1674
    %v1679 = vadd.f32 %v1603, %v1676
    %v1680 = vxor.u32 %v1678, 2147483648
    %v1681 = vxor.u32 %v1679, 2147483648
    %v1682 = vmul.f32 %v1680, 1.442695
    %v1683 = vpow.pop %v1682
    %v1684 = vmul.f32 %v1681, 1.442695
    %v1685 = vpow.pop %v1684
    %v1686 = vadd.f32 %v1683, 1.0
    %v1687 = vadd.f32 %v1685, 1.0
    %v1688 = vrcp.pop %v1686
    %v1689 = vmul.f32 1.0, %v1688
    %v1690 = vrcp.pop %v1687
    %v1691 = vmul.f32 1.0, %v1690
    %v1692 = vtanh.pop %v1679
    %v1693 = vmul.f32 %v1689, %v1591
    %1695 = vrot.lane.b32.xlu0 %v1692, 64
    %v1696 = vpop.permute.xlu0 %1695
    %v1698 = vmul.f32 %v1689, %v1696
    %1700 = vrot.lane.b32.xlu0 %v1698, 64
    %v1701 = vpop.permute.xlu0 %1700
    %v1703 = vadd.f32 %v1693, %v1701
    %v1704 = vtanh.pop %v1703
    %1706 = vrot.lane.b32.xlu0 %v1704, 64
    %v1707 = vpop.permute.xlu0 %1706
    %v1709 = vmul.f32 %v1691, %v1707
    %v1710 = vld [vmem:[#allocation2 + $0x30] sm:$0xff]
    %v1711 = vld [vmem:[#allocation2 + $0x38] sm:$0xff]
    %v1712 = vld [vmem:[#allocation2 + $0x40] sm:$0xff]
    %v1713 = vld [vmem:[#allocation2 + $0x48] sm:$0xff]
    %v1714 = vsel %vm94, %v1710, %v1712
    %v1715 = vsel %vm95, %v1711, %v1713
    %v1717 = vsel %vm296, %v1709, 0
    %1719 = vmatprep.subr.mxu0 %v1362
    %1720 = vmatpush1.msra.mxu0 %v1361
    %1721 = vmatprep.subr.mxu0 %v1364
    %1722 = vmatpush1.msra.mxu0 %v1363
    %1723 = vmatprep.subr.mxu0 %v1366
    %1724 = vmatpush1.msra.mxu0 %v1365
    %1725 = vmatprep.subr.mxu0 %v1368
    %1726 = vmatpush1.msra.mxu0 %v1367
    %1727 = vmatprep.subr.mxu0 %v1370
    %1728 = vmatpush1.msra.mxu0 %v1369
    %1729 = vmatprep.subr.mxu0 %v1372
    %1730 = vmatpush1.msra.mxu0 %v1371
    %1731 = vmatprep.subr.mxu0 %v1374
    %1732 = vmatpush1.msra.mxu0 %v1373
    %1733 = vmatprep.subr.mxu0 %v1376
    %1734 = vmatpush1.msra.mxu0 %v1375
    %1735 = vmatprep.subr.mxu0 0.0
    %1736 = vmatpush1.msra.mxu0 0.0
    %1737 = vmatprep.subr.mxu0 0.0
    %1738 = vmatpush1.msra.mxu0 0.0
    %1739 = vmatprep.subr.mxu0 0.0
    %1740 = vmatpush1.msra.mxu0 0.0
    %1741 = vmatprep.subr.mxu0 0.0
    %1742 = vmatpush1.msra.mxu0 0.0
    %1743 = vmatprep.subr.mxu0 0.0
    %1744 = vmatpush1.msra.mxu0 0.0
    %1745 = vmatprep.subr.mxu0 0.0
    %1746 = vmatpush1.msra.mxu0 0.0
    %1747 = vmatprep.subr.mxu0 0.0
    %1748 = vmatpush1.msra.mxu0 0.0
    %1749 = vmatprep.subr.mxu0 0.0
    %1750 = vmatpush1.msra.mxu0 0.0
    %1751 = vmatprep.subr.mxu0 0.0
    %1752 = vmatpush1.msra.mxu0 0.0
    %1753 = vmatprep.subr.mxu0 0.0
    %1754 = vmatpush1.msra.mxu0 0.0
    %1755 = vmatprep.subr.mxu0 0.0
    %1756 = vmatpush1.msra.mxu0 0.0
    %1757 = vmatprep.subr.mxu0 0.0
    %1758 = vmatpush1.msra.mxu0 0.0
    %1759 = vmatprep.subr.mxu0 0.0
    %1760 = vmatpush1.msra.mxu0 0.0
    %1761 = vmatprep.subr.mxu0 0.0
    %1762 = vmatpush1.msra.mxu0 0.0
    %1763 = vmatprep.subr.mxu0 0.0
    %1764 = vmatpush1.msra.mxu0 0.0
    %1765 = vmatprep.subr.mxu0 0.0
    %1766 = vmatpush1.msra.mxu0 0.0
    %1767 = vmatprep.subr.mxu0 0.0
    %1768 = vmatpush1.msra.mxu0 0.0
    %1769 = vmatprep.subr.mxu0 0.0
    %1770 = vmatpush1.msra.mxu0 0.0
    %1771 = vmatprep.subr.mxu0 0.0
    %1772 = vmatpush1.msra.mxu0 0.0
    %1773 = vmatprep.subr.mxu0 0.0
    %1774 = vmatpush1.msra.mxu0 0.0
    %1775 = vmatprep.subr.mxu0 0.0
    %1776 = vmatpush1.msra.mxu0 0.0
    %1777 = vmatprep.subr.mxu0 0.0
    %1778 = vmatpush1.msra.mxu0 0.0
    %1779 = vmatprep.subr.mxu0 0.0
    %1780 = vmatpush1.msra.mxu0 0.0
    %1781 = vmatprep.subr.mxu0 0.0
    %1782 = vmatpush1.msra.mxu0 0.0
    %1783 = vmatprep.mubr.f32.mxu0 0.0
    %1784 = vmatmul.mubr.f32.gmra.mrb[0].mxu0 %v1717
    %v1785 = vpop.f32.mrb[0].mxu0
    %v1786 = vadd.f32 0.0, %v1785
    %v1787 = vpop.f32.mrb[0].mxu0
    %v1788 = vadd.f32 0.0, %v1787
    %1789 = vdwg.mxu0
    %v1790 = vadd.f32 %v1714, %v1786
    %v1791 = vadd.f32 %v1715, %v1788
    %v1792 = vxor.u32 %v1790, 2147483648
    %v1793 = vxor.u32 %v1791, 2147483648
    %v1794 = vmul.f32 %v1792, 1.442695
    %v1795 = vpow.pop %v1794
    %v1796 = vmul.f32 %v1793, 1.442695
    %v1797 = vpow.pop %v1796
    %v1798 = vadd.f32 %v1795, 1.0
    %v1799 = vadd.f32 %v1797, 1.0
    %v1800 = vrcp.pop %v1798
    %v1801 = vmul.f32 1.0, %v1800
    %v1802 = vrcp.pop %v1799
    %v1803 = vmul.f32 1.0, %v1802
    %v1804 = vtanh.pop %v1791
    %v1805 = vmul.f32 %v1801, %v1703
    %1807 = vrot.lane.b32.xlu0 %v1804, 64
    %v1808 = vpop.permute.xlu0 %1807
    %v1810 = vmul.f32 %v1801, %v1808
    %1812 = vrot.lane.b32.xlu0 %v1810, 64
    %v1813 = vpop.permute.xlu0 %1812
    %v1815 = vadd.f32 %v1805, %v1813
    %v1816 = vtanh.pop %v1815
    %1818 = vrot.lane.b32.xlu0 %v1816, 64
    %v1819 = vpop.permute.xlu0 %1818
    %v1821 = vmul.f32 %v1803, %v1819
    %v1822 = vsel %vm94, %v1712, %v1710
    %v1823 = vsel %vm95, %v1713, %v1711
    %v1825 = vsel %vm296, %v1821, 0
    %1827 = vmatprep.subr.mxu0 %v1362
    %1828 = vmatpush1.msra.mxu0 %v1361
    %1829 = vmatprep.subr.mxu0 %v1364
    %1830 = vmatpush1.msra.mxu0 %v1363
    %1831 = vmatprep.subr.mxu0 %v1366
    %1832 = vmatpush1.msra.mxu0 %v1365
    %1833 = vmatprep.subr.mxu0 %v1368
    %1834 = vmatpush1.msra.mxu0 %v1367
    %1835 = vmatprep.subr.mxu0 %v1370
    %1836 = vmatpush1.msra.mxu0 %v1369
    %1837 = vmatprep.subr.mxu0 %v1372
    %1838 = vmatpush1.msra.mxu0 %v1371
    %1839 = vmatprep.subr.mxu0 %v1374
    %1840 = vmatpush1.msra.mxu0 %v1373
    %1841 = vmatprep.subr.mxu0 %v1376
    %1842 = vmatpush1.msra.mxu0 %v1375
    %1843 = vmatprep.subr.mxu0 0.0
    %1844 = vmatpush1.msra.mxu0 0.0
    %1845 = vmatprep.subr.mxu0 0.0
    %1846 = vmatpush1.msra.mxu0 0.0
    %1847 = vmatprep.subr.mxu0 0.0
    %1848 = vmatpush1.msra.mxu0 0.0
    %1849 = vmatprep.subr.mxu0 0.0
    %1850 = vmatpush1.msra.mxu0 0.0
    %1851 = vmatprep.subr.mxu0 0.0
    %1852 = vmatpush1.msra.mxu0 0.0
    %1853 = vmatprep.subr.mxu0 0.0
    %1854 = vmatpush1.msra.mxu0 0.0
    %1855 = vmatprep.subr.mxu0 0.0
    %1856 = vmatpush1.msra.mxu0 0.0
    %1857 = vmatprep.subr.mxu0 0.0
    %1858 = vmatpush1.msra.mxu0 0.0
    %1859 = vmatprep.subr.mxu0 0.0
    %1860 = vmatpush1.msra.mxu0 0.0
    %1861 = vmatprep.subr.mxu0 0.0
    %1862 = vmatpush1.msra.mxu0 0.0
    %1863 = vmatprep.subr.mxu0 0.0
    %1864 = vmatpush1.msra.mxu0 0.0
    %1865 = vmatprep.subr.mxu0 0.0
    %1866 = vmatpush1.msra.mxu0 0.0
    %1867 = vmatprep.subr.mxu0 0.0
    %1868 = vmatpush1.msra.mxu0 0.0
    %1869 = vmatprep.subr.mxu0 0.0
    %1870 = vmatpush1.msra.mxu0 0.0
    %1871 = vmatprep.subr.mxu0 0.0
    %1872 = vmatpush1.msra.mxu0 0.0
    %1873 = vmatprep.subr.mxu0 0.0
    %1874 = vmatpush1.msra.mxu0 0.0
    %1875 = vmatprep.subr.mxu0 0.0
    %1876 = vmatpush1.msra.mxu0 0.0
    %1877 = vmatprep.subr.mxu0 0.0
    %1878 = vmatpush1.msra.mxu0 0.0
    %1879 = vmatprep.subr.mxu0 0.0
    %1880 = vmatpush1.msra.mxu0 0.0
    %1881 = vmatprep.subr.mxu0 0.0
    %1882 = vmatpush1.msra.mxu0 0.0
    %1883 = vmatprep.subr.mxu0 0.0
    %1884 = vmatpush1.msra.mxu0 0.0
    %1885 = vmatprep.subr.mxu0 0.0
    %1886 = vmatpush1.msra.mxu0 0.0
    %1887 = vmatprep.subr.mxu0 0.0
    %1888 = vmatpush1.msra.mxu0 0.0
    %1889 = vmatprep.subr.mxu0 0.0
    %1890 = vmatpush1.msra.mxu0 0.0
    %1891 = vmatprep.mubr.f32.mxu0 0.0
    %1892 = vmatmul.mubr.f32.gmra.mrb[0].mxu0 %v1825
    %v1893 = vpop.f32.mrb[0].mxu0
    %v1894 = vadd.f32 0.0, %v1893
    %v1895 = vpop.f32.mrb[0].mxu0
    %v1896 = vadd.f32 0.0, %v1895
    %1897 = vdwg.mxu0
    %v1898 = vadd.f32 %v1822, %v1894
    %v1899 = vadd.f32 %v1823, %v1896
    %v1900 = vxor.u32 %v1898, 2147483648
    %v1901 = vxor.u32 %v1899, 2147483648
    %v1902 = vmul.f32 %v1900, 1.442695
    %v1903 = vpow.pop %v1902
    %v1904 = vmul.f32 %v1901, 1.442695
    %v1905 = vpow.pop %v1904
    %v1906 = vadd.f32 %v1903, 1.0
    %v1907 = vadd.f32 %v1905, 1.0
    %v1908 = vrcp.pop %v1906
    %v1909 = vmul.f32 1.0, %v1908
    %v1910 = vrcp.pop %v1907
    %v1911 = vmul.f32 1.0, %v1910
    %v1912 = vtanh.pop %v1899
    %v1913 = vmul.f32 %v1909, %v1815
    %1915 = vrot.lane.b32.xlu0 %v1912, 64
    %v1916 = vpop.permute.xlu0 %1915
    %v1918 = vmul.f32 %v1909, %v1916
    %1920 = vrot.lane.b32.xlu0 %v1918, 64
    %v1921 = vpop.permute.xlu0 %1920
    %v1923 = vadd.f32 %v1913, %v1921
    %v1924 = vtanh.pop %v1923
    %1926 = vrot.lane.b32.xlu0 %v1924, 64
    %v1927 = vpop.permute.xlu0 %1926
    %v1929 = vmul.f32 %v1911, %v1927
    %v1930 = vsel %vm94, %v1600, %v1598
    %v1931 = vsel %vm95, %v1601, %v1599
    %v1933 = vsel %vm296, %v1929, 0
    %1935 = vmatprep.subr.mxu0 %v1362
    %1936 = vmatpush1.msra.mxu0 %v1361
    %1937 = vmatprep.subr.mxu0 %v1364
    %1938 = vmatpush1.msra.mxu0 %v1363
    %1939 = vmatprep.subr.mxu0 %v1366
    %1940 = vmatpush1.msra.mxu0 %v1365
    %1941 = vmatprep.subr.mxu0 %v1368
    %1942 = vmatpush1.msra.mxu0 %v1367
    %1943 = vmatprep.subr.mxu0 %v1370
    %1944 = vmatpush1.msra.mxu0 %v1369
    %1945 = vmatprep.subr.mxu0 %v1372
    %1946 = vmatpush1.msra.mxu0 %v1371
    %1947 = vmatprep.subr.mxu0 %v1374
    %1948 = vmatpush1.msra.mxu0 %v1373
    %1949 = vmatprep.subr.mxu0 %v1376
    %1950 = vmatpush1.msra.mxu0 %v1375
    %1951 = vmatprep.subr.mxu0 0.0
    %1952 = vmatpush1.msra.mxu0 0.0
    %1953 = vmatprep.subr.mxu0 0.0
    %1954 = vmatpush1.msra.mxu0 0.0
    %1955 = vmatprep.subr.mxu0 0.0
    %1956 = vmatpush1.msra.mxu0 0.0
    %1957 = vmatprep.subr.mxu0 0.0
    %1958 = vmatpush1.msra.mxu0 0.0
    %1959 = vmatprep.subr.mxu0 0.0
    %1960 = vmatpush1.msra.mxu0 0.0
    %1961 = vmatprep.subr.mxu0 0.0
    %1962 = vmatpush1.msra.mxu0 0.0
    %1963 = vmatprep.subr.mxu0 0.0
    %1964 = vmatpush1.msra.mxu0 0.0
    %1965 = vmatprep.subr.mxu0 0.0
    %1966 = vmatpush1.msra.mxu0 0.0
    %1967 = vmatprep.subr.mxu0 0.0
    %1968 = vmatpush1.msra.mxu0 0.0
    %1969 = vmatprep.subr.mxu0 0.0
    %1970 = vmatpush1.msra.mxu0 0.0
    %1971 = vmatprep.subr.mxu0 0.0
    %1972 = vmatpush1.msra.mxu0 0.0
    %1973 = vmatprep.subr.mxu0 0.0
    %1974 = vmatpush1.msra.mxu0 0.0
    %1975 = vmatprep.subr.mxu0 0.0
    %1976 = vmatpush1.msra.mxu0 0.0
    %1977 = vmatprep.subr.mxu0 0.0
    %1978 = vmatpush1.msra.mxu0 0.0
    %1979 = vmatprep.subr.mxu0 0.0
    %1980 = vmatpush1.msra.mxu0 0.0
    %1981 = vmatprep.subr.mxu0 0.0
    %1982 = vmatpush1.msra.mxu0 0.0
    %1983 = vmatprep.subr.mxu0 0.0
    %1984 = vmatpush1.msra.mxu0 0.0
    %1985 = vmatprep.subr.mxu0 0.0
    %1986 = vmatpush1.msra.mxu0 0.0
    %1987 = vmatprep.subr.mxu0 0.0
    %1988 = vmatpush1.msra.mxu0 0.0
    %1989 = vmatprep.subr.mxu0 0.0
    %1990 = vmatpush1.msra.mxu0 0.0
    %1991 = vmatprep.subr.mxu0 0.0
    %1992 = vmatpush1.msra.mxu0 0.0
    %1993 = vmatprep.subr.mxu0 0.0
    %1994 = vmatpush1.msra.mxu0 0.0
    %1995 = vmatprep.subr.mxu0 0.0
    %1996 = vmatpush1.msra.mxu0 0.0
    %1997 = vmatprep.subr.mxu0 0.0
    %1998 = vmatpush1.msra.mxu0 0.0
    %1999 = vmatprep.mubr.f32.mxu0 0.0
    %2000 = vmatmul.mubr.f32.gmra.mrb[0].mxu0 %v1933
    %v2001 = vpop.f32.mrb[0].mxu0
    %v2002 = vadd.f32 0.0, %v2001
    %v2003 = vpop.f32.mrb[0].mxu0
    %v2004 = vadd.f32 0.0, %v2003
    %2005 = vdwg.mxu0
    %v2006 = vadd.f32 %v1930, %v2002
    %v2007 = vadd.f32 %v1931, %v2004
    %v2008 = vxor.u32 %v2006, 2147483648
    %v2009 = vxor.u32 %v2007, 2147483648
    %v2010 = vmul.f32 %v2008, 1.442695
    %v2011 = vpow.pop %v2010
    %v2012 = vmul.f32 %v2009, 1.442695
    %v2013 = vpow.pop %v2012
    %v2014 = vadd.f32 %v2011, 1.0
    %v2015 = vadd.f32 %v2013, 1.0
    %v2016 = vrcp.pop %v2014
    %v2017 = vmul.f32 1.0, %v2016
    %v2018 = vrcp.pop %v2015
    %v2019 = vmul.f32 1.0, %v2018
    %v2020 = vtanh.pop %v2007
    %v2021 = vmul.f32 %v2017, %v1923
    %2023 = vrot.lane.b32.xlu0 %v2020, 64
    %v2024 = vpop.permute.xlu0 %2023
    %v2026 = vmul.f32 %v2017, %v2024
    %2028 = vrot.lane.b32.xlu0 %v2026, 64
    %v2029 = vpop.permute.xlu0 %2028
    %v2031 = vadd.f32 %v2021, %v2029
    %v2032 = vtanh.pop %v2031
    %2034 = vrot.lane.b32.xlu0 %v2032, 64
    %v2035 = vpop.permute.xlu0 %2034
    %v2037 = vmul.f32 %v2019, %v2035
    %v2038 = vsel %vm94, %v1488, %v1486
    %v2039 = vsel %vm95, %v1489, %v1487
    %v2041 = vsel %vm296, %v2037, 0
    %2043 = vmatprep.subr.mxu0 %v1362
    %2044 = vmatpush1.msra.mxu0 %v1361
    %2045 = vmatprep.subr.mxu0 %v1364
    %2046 = vmatpush1.msra.mxu0 %v1363
    %2047 = vmatprep.subr.mxu0 %v1366
    %2048 = vmatpush1.msra.mxu0 %v1365
    %2049 = vmatprep.subr.mxu0 %v1368
    %2050 = vmatpush1.msra.mxu0 %v1367
    %2051 = vmatprep.subr.mxu0 %v1370
    %2052 = vmatpush1.msra.mxu0 %v1369
    %2053 = vmatprep.subr.mxu0 %v1372
    %2054 = vmatpush1.msra.mxu0 %v1371
    %2055 = vmatprep.subr.mxu0 %v1374
    %2056 = vmatpush1.msra.mxu0 %v1373
    %2057 = vmatprep.subr.mxu0 %v1376
    %2058 = vmatpush1.msra.mxu0 %v1375
    %2059 = vmatprep.subr.mxu0 0.0
    %2060 = vmatpush1.msra.mxu0 0.0
    %2061 = vmatprep.subr.mxu0 0.0
    %2062 = vmatpush1.msra.mxu0 0.0
    %2063 = vmatprep.subr.mxu0 0.0
    %2064 = vmatpush1.msra.mxu0 0.0
    %2065 = vmatprep.subr.mxu0 0.0
    %2066 = vmatpush1.msra.mxu0 0.0
    %2067 = vmatprep.subr.mxu0 0.0
    %2068 = vmatpush1.msra.mxu0 0.0
    %2069 = vmatprep.subr.mxu0 0.0
    %2070 = vmatpush1.msra.mxu0 0.0
    %2071 = vmatprep.subr.mxu0 0.0
    %2072 = vmatpush1.msra.mxu0 0.0
    %2073 = vmatprep.subr.mxu0 0.0
    %2074 = vmatpush1.msra.mxu0 0.0
    %2075 = vmatprep.subr.mxu0 0.0
    %2076 = vmatpush1.msra.mxu0 0.0
    %2077 = vmatprep.subr.mxu0 0.0
    %2078 = vmatpush1.msra.mxu0 0.0
    %2079 = vmatprep.subr.mxu0 0.0
    %2080 = vmatpush1.msra.mxu0 0.0
    %2081 = vmatprep.subr.mxu0 0.0
    %2082 = vmatpush1.msra.mxu0 0.0
    %2083 = vmatprep.subr.mxu0 0.0
    %2084 = vmatpush1.msra.mxu0 0.0
    %2085 = vmatprep.subr.mxu0 0.0
    %2086 = vmatpush1.msra.mxu0 0.0
    %2087 = vmatprep.subr.mxu0 0.0
    %2088 = vmatpush1.msra.mxu0 0.0
    %2089 = vmatprep.subr.mxu0 0.0
    %2090 = vmatpush1.msra.mxu0 0.0
    %2091 = vmatprep.subr.mxu0 0.0
    %2092 = vmatpush1.msra.mxu0 0.0
    %2093 = vmatprep.subr.mxu0 0.0
    %2094 = vmatpush1.msra.mxu0 0.0
    %2095 = vmatprep.subr.mxu0 0.0
    %2096 = vmatpush1.msra.mxu0 0.0
    %2097 = vmatprep.subr.mxu0 0.0
    %2098 = vmatpush1.msra.mxu0 0.0
    %2099 = vmatprep.subr.mxu0 0.0
    %2100 = vmatpush1.msra.mxu0 0.0
    %2101 = vmatprep.subr.mxu0 0.0
    %2102 = vmatpush1.msra.mxu0 0.0
    %2103 = vmatprep.subr.mxu0 0.0
    %2104 = vmatpush1.msra.mxu0 0.0
    %2105 = vmatprep.subr.mxu0 0.0
    %2106 = vmatpush1.msra.mxu0 0.0
    %2107 = vmatprep.mubr.f32.mxu0 0.0
    %2108 = vmatmul.mubr.f32.gmra.mrb[0].mxu0 %v2041
    %v2109 = vpop.f32.mrb[0].mxu0
    %v2110 = vadd.f32 0.0, %v2109
    %v2111 = vpop.f32.mrb[0].mxu0
    %v2112 = vadd.f32 0.0, %v2111
    %2113 = vdwg.mxu0
    %v2114 = vadd.f32 %v2038, %v2110
    %v2115 = vadd.f32 %v2039, %v2112
    %v2116 = vxor.u32 %v2114, 2147483648
    %v2117 = vxor.u32 %v2115, 2147483648
    %v2118 = vmul.f32 %v2116, 1.442695
    %v2119 = vpow.pop %v2118
    %v2120 = vmul.f32 %v2117, 1.442695
    %v2121 = vpow.pop %v2120
    %v2122 = vadd.f32 %v2119, 1.0
    %v2123 = vadd.f32 %v2121, 1.0
    %v2124 = vrcp.pop %v2122
    %v2125 = vmul.f32 1.0, %v2124
    %v2126 = vrcp.pop %v2123
    %v2127 = vmul.f32 1.0, %v2126
    %v2128 = vtanh.pop %v2115
    %v2129 = vmul.f32 %v2125, %v2031
    %2131 = vrot.lane.b32.xlu0 %v2128, 64
    %v2132 = vpop.permute.xlu0 %2131
    %v2134 = vmul.f32 %v2125, %v2132
    %2136 = vrot.lane.b32.xlu0 %v2134, 64
    %v2137 = vpop.permute.xlu0 %2136
    %v2139 = vadd.f32 %v2129, %v2137
    %v2140 = vtanh.pop %v2139
    %2142 = vrot.lane.b32.xlu0 %v2140, 64
    %v2143 = vpop.permute.xlu0 %2142
    %v2145 = vmul.f32 %v2127, %v2143
    %v2146 = vsel %vm94, %v1379, %v1377
    %v2147 = vsel %vm95, %v1380, %v1378
    %v2149 = vsel %vm296, %v2145, 0
    %2151 = vmatprep.subr.mxu0 %v1362
    %2152 = vmatpush1.msra.mxu0 %v1361
    %2153 = vmatprep.subr.mxu0 %v1364
    %2154 = vmatpush1.msra.mxu0 %v1363
    %2155 = vmatprep.subr.mxu0 %v1366
    %2156 = vmatpush1.msra.mxu0 %v1365
    %2157 = vmatprep.subr.mxu0 %v1368
    %2158 = vmatpush1.msra.mxu0 %v1367
    %2159 = vmatprep.subr.mxu0 %v1370
    %2160 = vmatpush1.msra.mxu0 %v1369
    %2161 = vmatprep.subr.mxu0 %v1372
    %2162 = vmatpush1.msra.mxu0 %v1371
    %2163 = vmatprep.subr.mxu0 %v1374
    %2164 = vmatpush1.msra.mxu0 %v1373
    %2165 = vmatprep.subr.mxu0 %v1376
    %2166 = vmatpush1.msra.mxu0 %v1375
    %2167 = vmatprep.subr.mxu0 0.0
    %2168 = vmatpush1.msra.mxu0 0.0
    %2169 = vmatprep.subr.mxu0 0.0
    %2170 = vmatpush1.msra.mxu0 0.0
    %2171 = vmatprep.subr.mxu0 0.0
    %2172 = vmatpush1.msra.mxu0 0.0
    %2173 = vmatprep.subr.mxu0 0.0
    %2174 = vmatpush1.msra.mxu0 0.0
    %2175 = vmatprep.subr.mxu0 0.0
    %2176 = vmatpush1.msra.mxu0 0.0
    %2177 = vmatprep.subr.mxu0 0.0
    %2178 = vmatpush1.msra.mxu0 0.0
    %2179 = vmatprep.subr.mxu0 0.0
    %2180 = vmatpush1.msra.mxu0 0.0
    %2181 = vmatprep.subr.mxu0 0.0
    %2182 = vmatpush1.msra.mxu0 0.0
    %2183 = vmatprep.subr.mxu0 0.0
    %2184 = vmatpush1.msra.mxu0 0.0
    %2185 = vmatprep.subr.mxu0 0.0
    %2186 = vmatpush1.msra.mxu0 0.0
    %2187 = vmatprep.subr.mxu0 0.0
    %2188 = vmatpush1.msra.mxu0 0.0
    %2189 = vmatprep.subr.mxu0 0.0
    %2190 = vmatpush1.msra.mxu0 0.0
    %2191 = vmatprep.subr.mxu0 0.0
    %2192 = vmatpush1.msra.mxu0 0.0
    %2193 = vmatprep.subr.mxu0 0.0
    %2194 = vmatpush1.msra.mxu0 0.0
    %2195 = vmatprep.subr.mxu0 0.0
    %2196 = vmatpush1.msra.mxu0 0.0
    %2197 = vmatprep.subr.mxu0 0.0
    %2198 = vmatpush1.msra.mxu0 0.0
    %2199 = vmatprep.subr.mxu0 0.0
    %2200 = vmatpush1.msra.mxu0 0.0
    %2201 = vmatprep.subr.mxu0 0.0
    %2202 = vmatpush1.msra.mxu0 0.0
    %2203 = vmatprep.subr.mxu0 0.0
    %2204 = vmatpush1.msra.mxu0 0.0
    %2205 = vmatprep.subr.mxu0 0.0
    %2206 = vmatpush1.msra.mxu0 0.0
    %2207 = vmatprep.subr.mxu0 0.0
    %2208 = vmatpush1.msra.mxu0 0.0
    %2209 = vmatprep.subr.mxu0 0.0
    %2210 = vmatpush1.msra.mxu0 0.0
    %2211 = vmatprep.subr.mxu0 0.0
    %2212 = vmatpush1.msra.mxu0 0.0
    %2213 = vmatprep.subr.mxu0 0.0
    %2214 = vmatpush1.msra.mxu0 0.0
    %2215 = vmatprep.mubr.f32.mxu0 0.0
    %2216 = vmatmul.mubr.f32.gmra.mrb[0].mxu0 %v2149
    %v2217 = vpop.f32.mrb[0].mxu0
    %v2218 = vadd.f32 0.0, %v2217
    %v2219 = vpop.f32.mrb[0].mxu0
    %v2220 = vadd.f32 0.0, %v2219
    %2221 = vdwg.mxu0
    %v2222 = vadd.f32 %v2146, %v2218
    %v2223 = vadd.f32 %v2147, %v2220
    %v2224 = vxor.u32 %v2222, 2147483648
    %v2225 = vxor.u32 %v2223, 2147483648
    %v2226 = vmul.f32 %v2224, 1.442695
    %v2227 = vpow.pop %v2226
    %v2228 = vmul.f32 %v2225, 1.442695
    %v2229 = vpow.pop %v2228
    %v2230 = vadd.f32 %v2227, 1.0
    %v2231 = vadd.f32 %v2229, 1.0
    %v2232 = vrcp.pop %v2230
    %v2233 = vmul.f32 1.0, %v2232
    %v2234 = vrcp.pop %v2231
    %v2235 = vmul.f32 1.0, %v2234
    %v2236 = vtanh.pop %v2223
    %v2237 = vmul.f32 %v2233, %v2139
    %2239 = vrot.lane.b32.xlu0 %v2236, 64
    %v2240 = vpop.permute.xlu0 %2239
    %v2242 = vmul.f32 %v2233, %v2240
    %2244 = vrot.lane.b32.xlu0 %v2242, 64
    %v2245 = vpop.permute.xlu0 %2244
    %v2247 = vadd.f32 %v2237, %v2245
    %v2248 = vtanh.pop %v2247
    %2250 = vrot.lane.b32.xlu0 %v2248, 64
    %v2251 = vpop.permute.xlu0 %2250
    %v2253 = vmul.f32 %v2235, %v2251
    %v2254 = vsel %vm1171, %v1485, %v2253
    %v2255 = vsel %vm1171, %v1597, %v2145
    %v2256 = vsel %vm1171, %v1709, %v2037
    %v2257 = vsel %vm1171, %v1821, %v1929
    %v2258 = vsel %vm1171, %v1929, %v1821
    %v2259 = vsel %vm1171, %v2037, %v1709
    %v2260 = vsel %vm1171, %v2145, %v1597
    %v2261 = vsel %vm1171, %v2253, %v1485
    %2262 = vst.msk [vmem:[%s7] sm:$0xff] %vm296, %v2254
    %2263 = vst.msk [vmem:[%s7 + $0x8] sm:$0xff] %vm296, %v2255
    %2264 = vst.msk [vmem:[%s7 + $0x10] sm:$0xff] %vm296, %v2256
    %2265 = vst.msk [vmem:[%s7 + $0x18] sm:$0xff] %vm296, %v2257
    %2266 = vst.msk [vmem:[%s7 + $0x20] sm:$0xff] %vm296, %v2258
    %2267 = vst.msk [vmem:[%s7 + $0x28] sm:$0xff] %vm296, %v2259
    %2268 = vst.msk [vmem:[%s7 + $0x30] sm:$0xff] %vm296, %v2260
    %2269 = vst.msk [vmem:[%s7 + $0x38] sm:$0xff] %vm296, %v2261
    // Predicated region
    $region42: #{lstm_feature_extractor.1} parent=1 // pred_check
      _
    $region43: #{lstm_feature_extractor.1} parent=1 // pred_check_branch
      %2271 = sbr.rel (0) target = $region45
    $region44: #{lstm_feature_extractor.1} parent=1 // pred_region
      _
    $region45: #{lstm_feature_extractor.1} parent=1 // pred_fallthru
      _
    // Predicated region
    $region46: #{lstm_feature_extractor.1} parent=1 // pred_check
      _
    $region47: #{lstm_feature_extractor.1} parent=1 // pred_check_branch
      %2273 = sbr.rel (0) target = $region49
    $region48: #{lstm_feature_extractor.1} parent=1 // pred_region
      _
    $region49: #{lstm_feature_extractor.1} parent=1 // pred_fallthru
      _
    %2274 = vsyncpa [#allocation4], 1
    %2275 = vsyncpa [#allocation6], 1

</llo_original>
